<compile_context>
chip_gen: v7x
topology: tpu7x:2x2x1
jax: 0.10.0
libtpu: 0.0.40
codegen_flags: <defaults>
</compile_context>

<pallas_src>
import functools

import numpy as np
import jax
import jax.numpy as jnp
from jax.experimental import pallas as pl
from jax.experimental.pallas import tpu as pltpu

F32 = jnp.float32
BF16 = jnp.bfloat16


def _round_up(x, m):
    return ((x + m - 1) // m) * m


def _full_spec(arr):
    return pl.BlockSpec(arr.shape, lambda n, _nd=arr.ndim: (0,) * _nd)


# 1-D decomposition of ConvTranspose(k=4, s=2, p=1):
#   out[2m + p] = sum_{d in {0,1}} in[m + p - 1 + d] * w[3 - p - 2d]
# Applying it twice and re-expressing the second transposed conv over the
# parity-packed output of the first gives, per final-output class v = 2p'+q
# (final index = 4m + v), two taps.  Each tap reads parity buffer `pi` at
# coarse offset `o` (a "source slot") with kernel index k of the second conv.
_CT2_SLOTS_1D = ((1, -1), (0, 0), (1, 0), (0, 1))          # (parity, offset)
_CT2_TAPS_1D = (
    ((0, 3), (1, 1)),    # v = 0: slot0*w[3] + slot1*w[1]
    ((1, 2), (2, 0)),    # v = 1
    ((1, 3), (2, 1)),    # v = 2
    ((2, 2), (3, 0)),    # v = 3
)


# ----------------------------------------------------------------------------
# The single fused kernel (one batch image per grid step)
# ----------------------------------------------------------------------------
def _decoder_kernel(H, W, n_res,
                    x_ref, mask_ref,
                    wproj_ref, bproj_ref, w1_ref, w2_ref, wup_ref, bup_ref,
                    wt1_ref, bt1_ref, wt2_ref, bt2_ref,
                    o_ref, src_ref):
    Wp = W + 2                       # row-padded width (1 zero column each side)
    P0 = Wp + 1                      # window start inside the padded scratch
    LW = x_ref.shape[-1]             # lane-padded window length (multiple of 128)
    mask = mask_ref[...]             # (1, LW) f32: 1.0 at real pixels, 0.0 at pads

    Ch = wproj_ref.shape[0]          # hidden_dim
    C1 = bt1_ref.shape[0] // 4       # hidden_dim // 2

    # Zero the padded-source scratch so the halo (top/bottom row pads) is zero.
    src_ref[...] = jnp.zeros_like(src_ref)

    def stack9(act_f32, c):
        # mask + cast, write the window into the padded scratch (direct slice
        # store), then gather the 9 shifted tap slices -> (9*c, LW) bf16 stack.
        src_ref[0:c, P0:P0 + LW] = (act_f32 * mask).astype(BF16)
        page = src_ref[0:c, :]
        slices = [page[:, P0 + oy * Wp + ox: P0 + oy * Wp + ox + LW]
                  for oy in (-1, 0, 1) for ox in (-1, 0, 1)]
        return jnp.concatenate(slices, axis=0)

    leaky = lambda v: jnp.where(v >= 0, v, 0.01 * v)

    # ---- proj: 1x1 conv + bias (input window is already zero-padded)
    y = jnp.dot(wproj_ref[...], x_ref[...].astype(BF16),
                preferred_element_type=F32) + bproj_ref[...]

    # ---- residual blocks: y = y + Conv1x1(ReLU(Conv3x3(ReLU(y))))
    for r in range(n_res):
        s = stack9(jnp.maximum(y, 0.0), Ch)
        h = jnp.dot(w1_ref[r], s, preferred_element_type=F32)      # (Ch, LW)
        y = y + jnp.dot(w2_ref[r], jnp.maximum(h, 0.0).astype(BF16),
                        preferred_element_type=F32)

    # ---- up-block Conv3x3 + bias (LeakyReLU pre-activation)
    s = stack9(leaky(y), Ch)
    z = jnp.dot(wup_ref[...], s, preferred_element_type=F32) + bup_ref[...]

    # ---- ConvTranspose #1 (k4,s2,p1), zero-free: one dot produces all 4
    #      output parities packed along the channel dim, still on the coarse grid.
    s = stack9(leaky(z), Ch)
    p = jnp.dot(wt1_ref[...], s, preferred_element_type=F32) + bt1_ref[...]   # (4*C1, LW)

    # ---- ConvTranspose #2 consumed directly on the parity-packed layout:
    #      the 16 final-output parity classes are 2x2 convs on the coarse grid,
    #      fused into a single (16*Cimg, 16*C1) GEMM.
    src_ref[0:4 * C1, P0:P0 + LW] = (leaky(p) * mask).astype(BF16)
    page2 = src_ref[0:4 * C1, :]
    slices = []
    for (pr, oy) in _CT2_SLOTS_1D:
        for (pc, ox) in _CT2_SLOTS_1D:
            blk = (2 * pr + pc) * C1
            base = P0 + oy * Wp + ox
            slices.append(page2[blk:blk + C1, base:base + LW])
    s2 = jnp.concatenate(slices, axis=0)                           # (16*C1, LW)

    out = jnp.dot(wt2_ref[...], s2, preferred_element_type=F32) + bt2_ref[...]
    o_ref[...] = jnp.tanh(out)                                     # (16*Cimg, LW)


# ----------------------------------------------------------------------------
# Wrapper: one pallas_call per forward pass
# ----------------------------------------------------------------------------
def decoder_forward_pallas(pp, x_nchw):
    N, Cd, H, W = x_nchw.shape
    Wp = W + 2
    LW = _round_up(H * Wp, 128)                    # lane-dense window
    Lscr = _round_up(LW + 2 * (Wp + 1), 128)       # padded-source scratch lanes
    Ch = pp["proj_w"].shape[0]
    C1 = pp["t1_b"].shape[0] // 4
    Cimg = pp["t2_b"].shape[0] // 16
    n_res = pp["res_w1"].shape[0]

    # Input -> row-padded window layout: row-major (H, W+2) with 2 zero columns
    # per row, flattened and lane-padded to LW (single tiny XLA pad/reshape).
    xw = jnp.pad(x_nchw, ((0, 0), (0, 0), (0, 0), (0, 2))).reshape(N, Cd, H * Wp)
    xw = jnp.pad(xw, ((0, 0), (0, 0), (0, LW - H * Wp)))

    # Window-validity mask (real pixels only), precomputed once on the host.
    j = np.arange(LW)
    mask = jnp.asarray((((j % Wp) < W) & (j < H * Wp)).astype(np.float32).reshape(1, LW))

    kernel = functools.partial(_decoder_kernel, H, W, n_res)
    out = pl.pallas_call(
        kernel,
        out_shape=jax.ShapeDtypeStruct((N, 16 * Cimg, LW), F32),
        grid=(N,),
        in_specs=[
            pl.BlockSpec((None, Cd, LW), lambda n: (n, 0, 0)),
            _full_spec(mask),
            _full_spec(pp["proj_w"]), _full_spec(pp["proj_b"]),
            _full_spec(pp["res_w1"]), _full_spec(pp["res_w2"]),
            _full_spec(pp["up_w"]), _full_spec(pp["up_b"]),
            _full_spec(pp["t1_w"]), _full_spec(pp["t1_b"]),
            _full_spec(pp["t2_w"]), _full_spec(pp["t2_b"]),
        ],
        out_specs=pl.BlockSpec((None, 16 * Cimg, LW), lambda n: (n, 0, 0)),
        scratch_shapes=[pltpu.VMEM((max(Ch, 4 * C1), Lscr), BF16)],
        compiler_params=pltpu.CompilerParams(dimension_semantics=("parallel",)),
    )(xw, mask, pp["proj_w"], pp["proj_b"], pp["res_w1"], pp["res_w2"],
      pp["up_w"], pp["up_b"], pp["t1_w"], pp["t1_b"], pp["t2_w"], pp["t2_b"])

    # (N, 16*Cimg, LW) -> NCHW (N, Cimg, 4H, 4W): drop the pad columns and
    # interleave the 16 parity classes (one small XLA reshape on the output).
    o = out[:, :, :H * Wp].reshape(N, 4, 4, Cimg, H, Wp)[..., :W]
    o = jnp.transpose(o, (0, 3, 4, 1, 5, 2))       # (N, Cimg, H, vy, W, vx)
    return o.reshape(N, Cimg, 4 * H, 4 * W)


# ----------------------------------------------------------------------------
# Parameters: raw (PyTorch layouts) + one-time weight re-layout
# ----------------------------------------------------------------------------
def init_decoder_params(key, img_channels=3, hidden_dim=32, n_resblocks=2,
                        codebook_dim=16, scale=0.05):
    keys = jax.random.split(key, 8 + 2 * n_resblocks)
    p = {}
    p["proj_w"] = scale * jax.random.normal(keys[0], (hidden_dim, codebook_dim, 1, 1), F32)
    p["proj_b"] = scale * jax.random.normal(keys[1], (hidden_dim,), F32)
    p["resblocks"] = []
    for i in range(n_resblocks):
        w1 = scale * jax.random.normal(keys[2 + 2 * i], (hidden_dim, hidden_dim, 3, 3), F32)
        w2 = scale * jax.random.normal(keys[3 + 2 * i], (hidden_dim, hidden_dim, 1, 1), F32)
        p["resblocks"].append((w1, w2))
    k = 2 + 2 * n_resblocks
    p["up_w"] = scale * jax.random.normal(keys[k + 0], (hidden_dim, hidden_dim, 3, 3), F32)
    p["up_b"] = scale * jax.random.normal(keys[k + 1], (hidden_dim,), F32)
    # PyTorch ConvTranspose2d weight layout: (Cin, Cout, kH, kW)
    p["t1_w"] = scale * jax.random.normal(keys[k + 2], (hidden_dim, hidden_dim // 2, 4, 4), F32)
    p["t1_b"] = scale * jax.random.normal(keys[k + 3], (hidden_dim // 2,), F32)
    p["t2_w"] = scale * jax.random.normal(keys[k + 4], (hidden_dim // 2, img_channels, 4, 4), F32)
    p["t2_b"] = scale * jax.random.normal(keys[k + 5], (img_channels,), F32)
    return p


def prepare_params(p):
    def conv3x3_cat(w):                  # (Cout, Cin, 3, 3) -> (Cout, 9*Cin), tap = ky*3+kx
        Cout, Cin = w.shape[0], w.shape[1]
        return jnp.transpose(w, (0, 2, 3, 1)).reshape(Cout, 9 * Cin).astype(BF16)

    def convt1_big(w):                   # PyTorch (Cin, Cout, 4, 4) -> (4*Cout, 9*Cin)
        Cin, Cout = w.shape[0], w.shape[1]
        wn = np.asarray(w)
        big = np.zeros((4 * Cout, 9 * Cin), np.float32)
        for py in range(2):
            for px in range(2):
                par = 2 * py + px
                for dy in range(2):
                    for dx in range(2):
                        oy, ox = py - 1 + dy, px - 1 + dx
                        ky, kx = 3 - py - 2 * dy, 3 - px - 2 * dx
                        t = (oy + 1) * 3 + (ox + 1)
                        big[par * Cout:(par + 1) * Cout,
                            t * Cin:(t + 1) * Cin] = wn[:, :, ky, kx].T
        return jnp.asarray(big).astype(BF16)

    def convt2_big(w):                   # PyTorch (C1, Cimg, 4, 4) -> (16*Cimg, 16*C1)
        C1, Cimg = w.shape[0], w.shape[1]
        wn = np.asarray(w)
        big = np.zeros((16 * Cimg, 16 * C1), np.float32)
        for vy in range(4):
            for vx in range(4):
                c2 = 4 * vy + vx
                for (sy, ky) in _CT2_TAPS_1D[vy]:
                    for (sx, kx) in _CT2_TAPS_1D[vx]:
                        s2 = 4 * sy + sx
                        big[c2 * Cimg:(c2 + 1) * Cimg,
                            s2 * C1:(s2 + 1) * C1] += wn[:, :, ky, kx].T
        return jnp.asarray(big).astype(BF16)

    return {
        "proj_w": p["proj_w"][:, :, 0, 0].astype(BF16),
        "proj_b": p["proj_b"].reshape(-1, 1).astype(F32),
        "res_w1": jnp.stack([conv3x3_cat(w1) for w1, _ in p["resblocks"]]),
        "res_w2": jnp.stack([w2[:, :, 0, 0] for _, w2 in p["resblocks"]]).astype(BF16),
        "up_w": conv3x3_cat(p["up_w"]),
        "up_b": p["up_b"].reshape(-1, 1).astype(F32),
        "t1_w": convt1_big(p["t1_w"]),
        "t1_b": jnp.tile(p["t1_b"], 4).reshape(-1, 1).astype(F32),
        "t2_w": convt2_big(p["t2_w"]),
        "t2_b": jnp.tile(p["t2_b"], 16).reshape(-1, 1).astype(F32),
    }


# ----------------------------------------------------------------------------
# Pure-JAX reference (independent path, numerical sanity check)
# ----------------------------------------------------------------------------
def _ref_conv(x, w_oihw, bias, padding):
    out = jax.lax.conv_general_dilated(
        x, w_oihw, (1, 1), [(padding, padding), (padding, padding)],
        dimension_numbers=("NCHW", "OIHW", "NCHW"))
    return out if bias is None else out + bias.reshape(1, -1, 1, 1)


def _ref_conv_transpose(x, w_iohw, bias):
    w_conv = jnp.flip(jnp.transpose(w_iohw, (1, 0, 2, 3)), axis=(2, 3))
    out = jax.lax.conv_general_dilated(
        x, w_conv, (1, 1), [(2, 2), (2, 2)], lhs_dilation=(2, 2),
        dimension_numbers=("NCHW", "OIHW", "NCHW"))
    return out if bias is None else out + bias.reshape(1, -1, 1, 1)


def decoder_forward_reference(params, x):
    relu = lambda v: jnp.maximum(v, 0.0)
    lrelu = lambda v: jnp.where(v >= 0, v, 0.01 * v)
    y = _ref_conv(x, params["proj_w"], params["proj_b"], 0)
    for w1, w2 in params["resblocks"]:
        h = _ref_conv(relu(y), w1, None, 1)
        h = _ref_conv(relu(h), w2, None, 0)
        y = y + h
    z = _ref_conv(lrelu(y), params["up_w"], params["up_b"], 1)
    z = _ref_conv_transpose(lrelu(z), params["t1_w"], params["t1_b"])
    z = _ref_conv_transpose(lrelu(z), params["t2_w"], params["t2_b"])
    return jnp.tanh(z)


# ----------------------------------------------------------------------------
if __name__ == "__main__":
    batch, codebook_dim, hidden_dim, img_channels, n_resblocks = 2, 16, 32, 3, 2
    h = w = 8

    key = jax.random.PRNGKey(0)
    pkey, xkey = jax.random.split(key)
    params = init_decoder_params(pkey, img_channels, hidden_dim, n_resblocks, codebook_dim)

    # PyTorch-style NCHW input.
    x = jax.random.normal(xkey, (batch, codebook_dim, h, w), F32)

    pp = prepare_params(params)                    # one-time weight re-layout
    fwd = jax.jit(decoder_forward_pallas)
    out = fwd(pp, x)
    jax.block_until_ready(out)
    assert out.shape == (batch, img_channels, 4 * h, 4 * w), out.shape

    ref = decoder_forward_reference(params, x)
    max_err = float(jnp.max(jnp.abs(out - ref)))
    assert max_err < 5e-2, f"max abs error vs reference: {max_err}"

    print("KERNEL_OK")
</pallas_src>

<mosaic_0001>
module attributes {stable_mosaic.version = 11 : i64} {
  func.func @_decoder_kernel(%arg0: i32, %arg1: memref<1x16x128xf32, #tpu.memory_space<vmem>>, %arg2: memref<1x128xf32, #tpu.memory_space<vmem>>, %arg3: memref<32x16xbf16, #tpu.memory_space<vmem>>, %arg4: memref<32x1xf32, #tpu.memory_space<vmem>>, %arg5: memref<2x32x288xbf16, #tpu.memory_space<vmem>>, %arg6: memref<2x32x32xbf16, #tpu.memory_space<vmem>>, %arg7: memref<32x288xbf16, #tpu.memory_space<vmem>>, %arg8: memref<32x1xf32, #tpu.memory_space<vmem>>, %arg9: memref<64x288xbf16, #tpu.memory_space<vmem>>, %arg10: memref<64x1xf32, #tpu.memory_space<vmem>>, %arg11: memref<48x256xbf16, #tpu.memory_space<vmem>>, %arg12: memref<48x1xf32, #tpu.memory_space<vmem>>, %arg13: memref<1x48x128xf32, #tpu.memory_space<vmem>>, %arg14: memref<64x256xbf16, #tpu.memory_space<vmem>>) attributes {dimension_semantics = [#tpu.dimension_semantics<parallel>], iteration_bounds = array<i64: 2>, scalar_prefetch = 0 : i64, scratch_operands = 1 : i64, tpu.core_type = #tpu.core_type<tc>, window_params = [{transform_indices = @transform_0, window_bounds = array<i64: 1, 16, 128>}, {pipeline_mode = #tpu.pipeline_mode<synchronous>, transform_indices = @transform_1, window_bounds = array<i64: 1, 128>}, {pipeline_mode = #tpu.pipeline_mode<synchronous>, transform_indices = @transform_2, window_bounds = array<i64: 32, 16>}, {pipeline_mode = #tpu.pipeline_mode<synchronous>, transform_indices = @transform_3, window_bounds = array<i64: 32, 1>}, {pipeline_mode = #tpu.pipeline_mode<synchronous>, transform_indices = @transform_4, window_bounds = array<i64: 2, 32, 288>}, {pipeline_mode = #tpu.pipeline_mode<synchronous>, transform_indices = @transform_5, window_bounds = array<i64: 2, 32, 32>}, {pipeline_mode = #tpu.pipeline_mode<synchronous>, transform_indices = @transform_6, window_bounds = array<i64: 32, 288>}, {pipeline_mode = #tpu.pipeline_mode<synchronous>, transform_indices = @transform_7, window_bounds = array<i64: 32, 1>}, {pipeline_mode = #tpu.pipeline_mode<synchronous>, transform_indices = @transform_8, window_bounds = array<i64: 64, 288>}, {pipeline_mode = #tpu.pipeline_mode<synchronous>, transform_indices = @transform_9, window_bounds = array<i64: 64, 1>}, {pipeline_mode = #tpu.pipeline_mode<synchronous>, transform_indices = @transform_10, window_bounds = array<i64: 48, 256>}, {pipeline_mode = #tpu.pipeline_mode<synchronous>, transform_indices = @transform_11, window_bounds = array<i64: 48, 1>}, {transform_indices = @transform_12, window_bounds = array<i64: 1, 48, 128>}]} {
    %c0 = arith.constant 0 : index
    %c0_0 = arith.constant 0 : index
    %0 = vector.load %arg2[%c0, %c0_0] : memref<1x128xf32, #tpu.memory_space<vmem>>, vector<1x128xf32>
    %cst = arith.constant 0.000000e+00 : bf16
    %1 = vector.broadcast %cst : bf16 to vector<64x256xbf16>
    %c0_1 = arith.constant 0 : index
    %c0_2 = arith.constant 0 : index
    %2 = vector.load %arg14[%c0_1, %c0_2] : memref<64x256xbf16, #tpu.memory_space<vmem>>, vector<64x256xbf16>
    tpu.vector_store %arg14[%c0_1, %c0_2], %1 {strides = array<i32>} : memref<64x256xbf16, #tpu.memory_space<vmem>>, vector<64x256xbf16>,
    %c0_3 = arith.constant 0 : index
    %c0_4 = arith.constant 0 : index
    %3 = vector.load %arg3[%c0_3, %c0_4] : memref<32x16xbf16, #tpu.memory_space<vmem>>, vector<32x16xbf16>
    %c0_5 = arith.constant 0 : index
    %c0_6 = arith.constant 0 : index
    %c0_7 = arith.constant 0 : index
    %4 = vector.load %arg1[%c0_5, %c0_6, %c0_7] : memref<1x16x128xf32, #tpu.memory_space<vmem>>, vector<1x16x128xf32>
    %5 = vector.shape_cast %4 : vector<1x16x128xf32> to vector<16x128xf32>
    %6 = arith.truncf %5 : vector<16x128xf32> to vector<16x128xbf16>
    %cst_8 = arith.constant dense<0.000000e+00> : vector<32x128xf32>
    %7 = tpu.matmul %3, %6, %cst_8 {dimension_numbers = #tpu.dot_dimension_numbers<[1], [0], [0], [1], [0, 0, 1, 1], [], []>} : vector<32x16xbf16>, vector<16x128xbf16>, vector<32x128xf32> -> vector<32x128xf32>
    %c0_9 = arith.constant 0 : index
    %c0_10 = arith.constant 0 : index
    %8 = vector.load %arg4[%c0_9, %c0_10] : memref<32x1xf32, #tpu.memory_space<vmem>>, vector<32x1xf32>
    %9 = vector.broadcast %8 : vector<32x1xf32> to vector<32x128xf32>
    %10 = arith.addf %7, %9 : vector<32x128xf32>
    %cst_11 = arith.constant 0.000000e+00 : f32
    %11 = vector.broadcast %cst_11 : f32 to vector<32x128xf32>
    %12 = arith.maximumf %10, %11 : vector<32x128xf32>
    %13 = vector.broadcast %0 : vector<1x128xf32> to vector<32x128xf32>
    %14 = arith.mulf %12, %13 : vector<32x128xf32>
    %15 = arith.truncf %14 : vector<32x128xf32> to vector<32x128xbf16>
    %c0_12 = arith.constant 0 : index
    %c11 = arith.constant 11 : index
    %16 = vector.load %arg14[%c0_12, %c11] : memref<64x256xbf16, #tpu.memory_space<vmem>>, vector<32x128xbf16>
    tpu.vector_store %arg14[%c0_12, %c11], %15 {strides = array<i32>} : memref<64x256xbf16, #tpu.memory_space<vmem>>, vector<32x128xbf16>,
    %c0_13 = arith.constant 0 : index
    %c0_14 = arith.constant 0 : index
    %17 = vector.load %arg14[%c0_13, %c0_14] : memref<64x256xbf16, #tpu.memory_space<vmem>>, vector<32x256xbf16>
    %18 = vector.extract_strided_slice %17 {offsets = [0, 0], sizes = [32, 128], strides = [1, 1]} : vector<32x256xbf16> to vector<32x128xbf16>
    %19 = vector.extract_strided_slice %17 {offsets = [0, 1], sizes = [32, 128], strides = [1, 1]} : vector<32x256xbf16> to vector<32x128xbf16>
    %20 = vector.extract_strided_slice %17 {offsets = [0, 2], sizes = [32, 128], strides = [1, 1]} : vector<32x256xbf16> to vector<32x128xbf16>
    %21 = vector.extract_strided_slice %17 {offsets = [0, 10], sizes = [32, 128], strides = [1, 1]} : vector<32x256xbf16> to vector<32x128xbf16>
    %22 = vector.extract_strided_slice %17 {offsets = [0, 11], sizes = [32, 128], strides = [1, 1]} : vector<32x256xbf16> to vector<32x128xbf16>
    %23 = vector.extract_strided_slice %17 {offsets = [0, 12], sizes = [32, 128], strides = [1, 1]} : vector<32x256xbf16> to vector<32x128xbf16>
    %24 = vector.extract_strided_slice %17 {offsets = [0, 20], sizes = [32, 128], strides = [1, 1]} : vector<32x256xbf16> to vector<32x128xbf16>
    %25 = vector.extract_strided_slice %17 {offsets = [0, 21], sizes = [32, 128], strides = [1, 1]} : vector<32x256xbf16> to vector<32x128xbf16>
    %26 = vector.extract_strided_slice %17 {offsets = [0, 22], sizes = [32, 128], strides = [1, 1]} : vector<32x256xbf16> to vector<32x128xbf16>
    %27 = tpu.concatenate %18, %19, %20, %21, %22, %23, %24, %25, %26 in 0 : vector<32x128xbf16>, vector<32x128xbf16>, vector<32x128xbf16>, vector<32x128xbf16>, vector<32x128xbf16>, vector<32x128xbf16>, vector<32x128xbf16>, vector<32x128xbf16>, vector<32x128xbf16> -> vector<288x128xbf16>
    %c0_15 = arith.constant 0 : index
    %c0_16 = arith.constant 0 : index
    %c0_17 = arith.constant 0 : index
    %28 = vector.load %arg5[%c0_15, %c0_16, %c0_17] : memref<2x32x288xbf16, #tpu.memory_space<vmem>>, vector<1x32x288xbf16>
    %29 = vector.shape_cast %28 : vector<1x32x288xbf16> to vector<32x288xbf16>
    %cst_18 = arith.constant dense<0.000000e+00> : vector<32x128xf32>
    %30 = tpu.matmul %29, %27, %cst_18 {dimension_numbers = #tpu.dot_dimension_numbers<[1], [0], [0], [1], [0, 0, 1, 1], [], []>} : vector<32x288xbf16>, vector<288x128xbf16>, vector<32x128xf32> -> vector<32x128xf32>
    %c0_19 = arith.constant 0 : index
    %c0_20 = arith.constant 0 : index
    %c0_21 = arith.constant 0 : index
    %31 = vector.load %arg6[%c0_19, %c0_20, %c0_21] : memref<2x32x32xbf16, #tpu.memory_space<vmem>>, vector<1x32x32xbf16>
    %32 = vector.shape_cast %31 : vector<1x32x32xbf16> to vector<32x32xbf16>
    %cst_22 = arith.constant 0.000000e+00 : f32
    %33 = vector.broadcast %cst_22 : f32 to vector<32x128xf32>
    %34 = arith.maximumf %30, %33 : vector<32x128xf32>
    %35 = arith.truncf %34 : vector<32x128xf32> to vector<32x128xbf16>
    %cst_23 = arith.constant dense<0.000000e+00> : vector<32x128xf32>
    %36 = tpu.matmul %32, %35, %cst_23 {dimension_numbers = #tpu.dot_dimension_numbers<[1], [0], [0], [1], [0, 0, 1, 1], [], []>} : vector<32x32xbf16>, vector<32x128xbf16>, vector<32x128xf32> -> vector<32x128xf32>
    %37 = arith.addf %10, %36 : vector<32x128xf32>
    %cst_24 = arith.constant 0.000000e+00 : f32
    %38 = vector.broadcast %cst_24 : f32 to vector<32x128xf32>
    %39 = arith.maximumf %37, %38 : vector<32x128xf32>
    %40 = vector.broadcast %0 : vector<1x128xf32> to vector<32x128xf32>
    %41 = arith.mulf %39, %40 : vector<32x128xf32>
    %42 = arith.truncf %41 : vector<32x128xf32> to vector<32x128xbf16>
    %c0_25 = arith.constant 0 : index
    %c11_26 = arith.constant 11 : index
    %43 = vector.load %arg14[%c0_25, %c11_26] : memref<64x256xbf16, #tpu.memory_space<vmem>>, vector<32x128xbf16>
    tpu.vector_store %arg14[%c0_25, %c11_26], %42 {strides = array<i32>} : memref<64x256xbf16, #tpu.memory_space<vmem>>, vector<32x128xbf16>,
    %c0_27 = arith.constant 0 : index
    %c0_28 = arith.constant 0 : index
    %44 = vector.load %arg14[%c0_27, %c0_28] : memref<64x256xbf16, #tpu.memory_space<vmem>>, vector<32x256xbf16>
    %45 = vector.extract_strided_slice %44 {offsets = [0, 0], sizes = [32, 128], strides = [1, 1]} : vector<32x256xbf16> to vector<32x128xbf16>
    %46 = vector.extract_strided_slice %44 {offsets = [0, 1], sizes = [32, 128], strides = [1, 1]} : vector<32x256xbf16> to vector<32x128xbf16>
    %47 = vector.extract_strided_slice %44 {offsets = [0, 2], sizes = [32, 128], strides = [1, 1]} : vector<32x256xbf16> to vector<32x128xbf16>
    %48 = vector.extract_strided_slice %44 {offsets = [0, 10], sizes = [32, 128], strides = [1, 1]} : vector<32x256xbf16> to vector<32x128xbf16>
    %49 = vector.extract_strided_slice %44 {offsets = [0, 11], sizes = [32, 128], strides = [1, 1]} : vector<32x256xbf16> to vector<32x128xbf16>
    %50 = vector.extract_strided_slice %44 {offsets = [0, 12], sizes = [32, 128], strides = [1, 1]} : vector<32x256xbf16> to vector<32x128xbf16>
    %51 = vector.extract_strided_slice %44 {offsets = [0, 20], sizes = [32, 128], strides = [1, 1]} : vector<32x256xbf16> to vector<32x128xbf16>
    %52 = vector.extract_strided_slice %44 {offsets = [0, 21], sizes = [32, 128], strides = [1, 1]} : vector<32x256xbf16> to vector<32x128xbf16>
    %53 = vector.extract_strided_slice %44 {offsets = [0, 22], sizes = [32, 128], strides = [1, 1]} : vector<32x256xbf16> to vector<32x128xbf16>
    %54 = tpu.concatenate %45, %46, %47, %48, %49, %50, %51, %52, %53 in 0 : vector<32x128xbf16>, vector<32x128xbf16>, vector<32x128xbf16>, vector<32x128xbf16>, vector<32x128xbf16>, vector<32x128xbf16>, vector<32x128xbf16>, vector<32x128xbf16>, vector<32x128xbf16> -> vector<288x128xbf16>
    %c1 = arith.constant 1 : index
    %c0_29 = arith.constant 0 : index
    %c0_30 = arith.constant 0 : index
    %55 = vector.load %arg5[%c1, %c0_29, %c0_30] : memref<2x32x288xbf16, #tpu.memory_space<vmem>>, vector<1x32x288xbf16>
    %56 = vector.shape_cast %55 : vector<1x32x288xbf16> to vector<32x288xbf16>
    %cst_31 = arith.constant dense<0.000000e+00> : vector<32x128xf32>
    %57 = tpu.matmul %56, %54, %cst_31 {dimension_numbers = #tpu.dot_dimension_numbers<[1], [0], [0], [1], [0, 0, 1, 1], [], []>} : vector<32x288xbf16>, vector<288x128xbf16>, vector<32x128xf32> -> vector<32x128xf32>
    %c1_32 = arith.constant 1 : index
    %c0_33 = arith.constant 0 : index
    %c0_34 = arith.constant 0 : index
    %58 = vector.load %arg6[%c1_32, %c0_33, %c0_34] : memref<2x32x32xbf16, #tpu.memory_space<vmem>>, vector<1x32x32xbf16>
    %59 = vector.shape_cast %58 : vector<1x32x32xbf16> to vector<32x32xbf16>
    %cst_35 = arith.constant 0.000000e+00 : f32
    %60 = vector.broadcast %cst_35 : f32 to vector<32x128xf32>
    %61 = arith.maximumf %57, %60 : vector<32x128xf32>
    %62 = arith.truncf %61 : vector<32x128xf32> to vector<32x128xbf16>
    %cst_36 = arith.constant dense<0.000000e+00> : vector<32x128xf32>
    %63 = tpu.matmul %59, %62, %cst_36 {dimension_numbers = #tpu.dot_dimension_numbers<[1], [0], [0], [1], [0, 0, 1, 1], [], []>} : vector<32x32xbf16>, vector<32x128xbf16>, vector<32x128xf32> -> vector<32x128xf32>
    %64 = arith.addf %37, %63 : vector<32x128xf32>
    %cst_37 = arith.constant 0.000000e+00 : f32
    %65 = vector.broadcast %cst_37 : f32 to vector<32x128xf32>
    %66 = arith.cmpf oge, %64, %65 : vector<32x128xf32>
    %cst_38 = arith.constant 0.00999999977 : f32
    %67 = vector.broadcast %cst_38 : f32 to vector<32x128xf32>
    %68 = arith.mulf %67, %64 : vector<32x128xf32>
    %69 = arith.select %66, %64, %68 : vector<32x128xi1>, vector<32x128xf32>
    %70 = vector.broadcast %0 : vector<1x128xf32> to vector<32x128xf32>
    %71 = arith.mulf %69, %70 : vector<32x128xf32>
    %72 = arith.truncf %71 : vector<32x128xf32> to vector<32x128xbf16>
    %c0_39 = arith.constant 0 : index
    %c11_40 = arith.constant 11 : index
    %73 = vector.load %arg14[%c0_39, %c11_40] : memref<64x256xbf16, #tpu.memory_space<vmem>>, vector<32x128xbf16>
    tpu.vector_store %arg14[%c0_39, %c11_40], %72 {strides = array<i32>} : memref<64x256xbf16, #tpu.memory_space<vmem>>, vector<32x128xbf16>,
    %c0_41 = arith.constant 0 : index
    %c0_42 = arith.constant 0 : index
    %74 = vector.load %arg14[%c0_41, %c0_42] : memref<64x256xbf16, #tpu.memory_space<vmem>>, vector<32x256xbf16>
    %75 = vector.extract_strided_slice %74 {offsets = [0, 0], sizes = [32, 128], strides = [1, 1]} : vector<32x256xbf16> to vector<32x128xbf16>
    %76 = vector.extract_strided_slice %74 {offsets = [0, 1], sizes = [32, 128], strides = [1, 1]} : vector<32x256xbf16> to vector<32x128xbf16>
    %77 = vector.extract_strided_slice %74 {offsets = [0, 2], sizes = [32, 128], strides = [1, 1]} : vector<32x256xbf16> to vector<32x128xbf16>
    %78 = vector.extract_strided_slice %74 {offsets = [0, 10], sizes = [32, 128], strides = [1, 1]} : vector<32x256xbf16> to vector<32x128xbf16>
    %79 = vector.extract_strided_slice %74 {offsets = [0, 11], sizes = [32, 128], strides = [1, 1]} : vector<32x256xbf16> to vector<32x128xbf16>
    %80 = vector.extract_strided_slice %74 {offsets = [0, 12], sizes = [32, 128], strides = [1, 1]} : vector<32x256xbf16> to vector<32x128xbf16>
    %81 = vector.extract_strided_slice %74 {offsets = [0, 20], sizes = [32, 128], strides = [1, 1]} : vector<32x256xbf16> to vector<32x128xbf16>
    %82 = vector.extract_strided_slice %74 {offsets = [0, 21], sizes = [32, 128], strides = [1, 1]} : vector<32x256xbf16> to vector<32x128xbf16>
    %83 = vector.extract_strided_slice %74 {offsets = [0, 22], sizes = [32, 128], strides = [1, 1]} : vector<32x256xbf16> to vector<32x128xbf16>
    %84 = tpu.concatenate %75, %76, %77, %78, %79, %80, %81, %82, %83 in 0 : vector<32x128xbf16>, vector<32x128xbf16>, vector<32x128xbf16>, vector<32x128xbf16>, vector<32x128xbf16>, vector<32x128xbf16>, vector<32x128xbf16>, vector<32x128xbf16>, vector<32x128xbf16> -> vector<288x128xbf16>
    %c0_43 = arith.constant 0 : index
    %c0_44 = arith.constant 0 : index
    %85 = vector.load %arg7[%c0_43, %c0_44] : memref<32x288xbf16, #tpu.memory_space<vmem>>, vector<32x288xbf16>
    %cst_45 = arith.constant dense<0.000000e+00> : vector<32x128xf32>
    %86 = tpu.matmul %85, %84, %cst_45 {dimension_numbers = #tpu.dot_dimension_numbers<[1], [0], [0], [1], [0, 0, 1, 1], [], []>} : vector<32x288xbf16>, vector<288x128xbf16>, vector<32x128xf32> -> vector<32x128xf32>
    %c0_46 = arith.constant 0 : index
    %c0_47 = arith.constant 0 : index
    %87 = vector.load %arg8[%c0_46, %c0_47] : memref<32x1xf32, #tpu.memory_space<vmem>>, vector<32x1xf32>
    %88 = vector.broadcast %87 : vector<32x1xf32> to vector<32x128xf32>
    %89 = arith.addf %86, %88 : vector<32x128xf32>
    %cst_48 = arith.constant 0.000000e+00 : f32
    %90 = vector.broadcast %cst_48 : f32 to vector<32x128xf32>
    %91 = arith.cmpf oge, %89, %90 : vector<32x128xf32>
    %cst_49 = arith.constant 0.00999999977 : f32
    %92 = vector.broadcast %cst_49 : f32 to vector<32x128xf32>
    %93 = arith.mulf %92, %89 : vector<32x128xf32>
    %94 = arith.select %91, %89, %93 : vector<32x128xi1>, vector<32x128xf32>
    %95 = vector.broadcast %0 : vector<1x128xf32> to vector<32x128xf32>
    %96 = arith.mulf %94, %95 : vector<32x128xf32>
    %97 = arith.truncf %96 : vector<32x128xf32> to vector<32x128xbf16>
    %c0_50 = arith.constant 0 : index
    %c11_51 = arith.constant 11 : index
    %98 = vector.load %arg14[%c0_50, %c11_51] : memref<64x256xbf16, #tpu.memory_space<vmem>>, vector<32x128xbf16>
    tpu.vector_store %arg14[%c0_50, %c11_51], %97 {strides = array<i32>} : memref<64x256xbf16, #tpu.memory_space<vmem>>, vector<32x128xbf16>,
    %c0_52 = arith.constant 0 : index
    %c0_53 = arith.constant 0 : index
    %99 = vector.load %arg14[%c0_52, %c0_53] : memref<64x256xbf16, #tpu.memory_space<vmem>>, vector<32x256xbf16>
    %100 = vector.extract_strided_slice %99 {offsets = [0, 0], sizes = [32, 128], strides = [1, 1]} : vector<32x256xbf16> to vector<32x128xbf16>
    %101 = vector.extract_strided_slice %99 {offsets = [0, 1], sizes = [32, 128], strides = [1, 1]} : vector<32x256xbf16> to vector<32x128xbf16>
    %102 = vector.extract_strided_slice %99 {offsets = [0, 2], sizes = [32, 128], strides = [1, 1]} : vector<32x256xbf16> to vector<32x128xbf16>
    %103 = vector.extract_strided_slice %99 {offsets = [0, 10], sizes = [32, 128], strides = [1, 1]} : vector<32x256xbf16> to vector<32x128xbf16>
    %104 = vector.extract_strided_slice %99 {offsets = [0, 11], sizes = [32, 128], strides = [1, 1]} : vector<32x256xbf16> to vector<32x128xbf16>
    %105 = vector.extract_strided_slice %99 {offsets = [0, 12], sizes = [32, 128], strides = [1, 1]} : vector<32x256xbf16> to vector<32x128xbf16>
    %106 = vector.extract_strided_slice %99 {offsets = [0, 20], sizes = [32, 128], strides = [1, 1]} : vector<32x256xbf16> to vector<32x128xbf16>
    %107 = vector.extract_strided_slice %99 {offsets = [0, 21], sizes = [32, 128], strides = [1, 1]} : vector<32x256xbf16> to vector<32x128xbf16>
    %108 = vector.extract_strided_slice %99 {offsets = [0, 22], sizes = [32, 128], strides = [1, 1]} : vector<32x256xbf16> to vector<32x128xbf16>
    %109 = tpu.concatenate %100, %101, %102, %103, %104, %105, %106, %107, %108 in 0 : vector<32x128xbf16>, vector<32x128xbf16>, vector<32x128xbf16>, vector<32x128xbf16>, vector<32x128xbf16>, vector<32x128xbf16>, vector<32x128xbf16>, vector<32x128xbf16>, vector<32x128xbf16> -> vector<288x128xbf16>
    %c0_54 = arith.constant 0 : index
    %c0_55 = arith.constant 0 : index
    %110 = vector.load %arg9[%c0_54, %c0_55] : memref<64x288xbf16, #tpu.memory_space<vmem>>, vector<64x288xbf16>
    %cst_56 = arith.constant dense<0.000000e+00> : vector<64x128xf32>
    %111 = tpu.matmul %110, %109, %cst_56 {dimension_numbers = #tpu.dot_dimension_numbers<[1], [0], [0], [1], [0, 0, 1, 1], [], []>} : vector<64x288xbf16>, vector<288x128xbf16>, vector<64x128xf32> -> vector<64x128xf32>
    %c0_57 = arith.constant 0 : index
    %c0_58 = arith.constant 0 : index
    %112 = vector.load %arg10[%c0_57, %c0_58] : memref<64x1xf32, #tpu.memory_space<vmem>>, vector<64x1xf32>
    %113 = vector.broadcast %112 : vector<64x1xf32> to vector<64x128xf32>
    %114 = arith.addf %111, %113 : vector<64x128xf32>
    %cst_59 = arith.constant 0.000000e+00 : f32
    %115 = vector.broadcast %cst_59 : f32 to vector<64x128xf32>
    %116 = arith.cmpf oge, %114, %115 : vector<64x128xf32>
    %cst_60 = arith.constant 0.00999999977 : f32
    %117 = vector.broadcast %cst_60 : f32 to vector<64x128xf32>
    %118 = arith.mulf %117, %114 : vector<64x128xf32>
    %119 = arith.select %116, %114, %118 : vector<64x128xi1>, vector<64x128xf32>
    %120 = vector.broadcast %0 : vector<1x128xf32> to vector<64x128xf32>
    %121 = arith.mulf %119, %120 : vector<64x128xf32>
    %122 = arith.truncf %121 : vector<64x128xf32> to vector<64x128xbf16>
    %c0_61 = arith.constant 0 : index
    %c11_62 = arith.constant 11 : index
    %123 = vector.load %arg14[%c0_61, %c11_62] : memref<64x256xbf16, #tpu.memory_space<vmem>>, vector<64x128xbf16>
    tpu.vector_store %arg14[%c0_61, %c11_62], %122 {strides = array<i32>} : memref<64x256xbf16, #tpu.memory_space<vmem>>, vector<64x128xbf16>,
    %c0_63 = arith.constant 0 : index
    %c0_64 = arith.constant 0 : index
    %124 = vector.load %arg14[%c0_63, %c0_64] : memref<64x256xbf16, #tpu.memory_space<vmem>>, vector<64x256xbf16>
    %125 = vector.extract_strided_slice %124 {offsets = [48, 0], sizes = [16, 128], strides = [1, 1]} : vector<64x256xbf16> to vector<16x128xbf16>
    %126 = vector.extract_strided_slice %124 {offsets = [32, 1], sizes = [16, 128], strides = [1, 1]} : vector<64x256xbf16> to vector<16x128xbf16>
    %127 = vector.extract_strided_slice %124 {offsets = [48, 1], sizes = [16, 128], strides = [1, 1]} : vector<64x256xbf16> to vector<16x128xbf16>
    %128 = vector.extract_strided_slice %124 {offsets = [32, 2], sizes = [16, 128], strides = [1, 1]} : vector<64x256xbf16> to vector<16x128xbf16>
    %129 = vector.extract_strided_slice %124 {offsets = [16, 10], sizes = [16, 128], strides = [1, 1]} : vector<64x256xbf16> to vector<16x128xbf16>
    %130 = vector.extract_strided_slice %124 {offsets = [0, 11], sizes = [16, 128], strides = [1, 1]} : vector<64x256xbf16> to vector<16x128xbf16>
    %131 = vector.extract_strided_slice %124 {offsets = [16, 11], sizes = [16, 128], strides = [1, 1]} : vector<64x256xbf16> to vector<16x128xbf16>
    %132 = vector.extract_strided_slice %124 {offsets = [0, 12], sizes = [16, 128], strides = [1, 1]} : vector<64x256xbf16> to vector<16x128xbf16>
    %133 = vector.extract_strided_slice %124 {offsets = [48, 10], sizes = [16, 128], strides = [1, 1]} : vector<64x256xbf16> to vector<16x128xbf16>
    %134 = vector.extract_strided_slice %124 {offsets = [32, 11], sizes = [16, 128], strides = [1, 1]} : vector<64x256xbf16> to vector<16x128xbf16>
    %135 = vector.extract_strided_slice %124 {offsets = [48, 11], sizes = [16, 128], strides = [1, 1]} : vector<64x256xbf16> to vector<16x128xbf16>
    %136 = vector.extract_strided_slice %124 {offsets = [32, 12], sizes = [16, 128], strides = [1, 1]} : vector<64x256xbf16> to vector<16x128xbf16>
    %137 = vector.extract_strided_slice %124 {offsets = [16, 20], sizes = [16, 128], strides = [1, 1]} : vector<64x256xbf16> to vector<16x128xbf16>
    %138 = vector.extract_strided_slice %124 {offsets = [0, 21], sizes = [16, 128], strides = [1, 1]} : vector<64x256xbf16> to vector<16x128xbf16>
    %139 = vector.extract_strided_slice %124 {offsets = [16, 21], sizes = [16, 128], strides = [1, 1]} : vector<64x256xbf16> to vector<16x128xbf16>
    %140 = vector.extract_strided_slice %124 {offsets = [0, 22], sizes = [16, 128], strides = [1, 1]} : vector<64x256xbf16> to vector<16x128xbf16>
    %141 = tpu.concatenate %125, %126, %127, %128, %129, %130, %131, %132, %133, %134, %135, %136, %137, %138, %139, %140 in 0 : vector<16x128xbf16>, vector<16x128xbf16>, vector<16x128xbf16>, vector<16x128xbf16>, vector<16x128xbf16>, vector<16x128xbf16>, vector<16x128xbf16>, vector<16x128xbf16>, vector<16x128xbf16>, vector<16x128xbf16>, vector<16x128xbf16>, vector<16x128xbf16>, vector<16x128xbf16>, vector<16x128xbf16>, vector<16x128xbf16>, vector<16x128xbf16> -> vector<256x128xbf16>
    %c0_65 = arith.constant 0 : index
    %c0_66 = arith.constant 0 : index
    %142 = vector.load %arg11[%c0_65, %c0_66] : memref<48x256xbf16, #tpu.memory_space<vmem>>, vector<48x256xbf16>
    %cst_67 = arith.constant dense<0.000000e+00> : vector<48x128xf32>
    %143 = tpu.matmul %142, %141, %cst_67 {dimension_numbers = #tpu.dot_dimension_numbers<[1], [0], [0], [1], [0, 0, 1, 1], [], []>} : vector<48x256xbf16>, vector<256x128xbf16>, vector<48x128xf32> -> vector<48x128xf32>
    %c0_68 = arith.constant 0 : index
    %c0_69 = arith.constant 0 : index
    %144 = vector.load %arg12[%c0_68, %c0_69] : memref<48x1xf32, #tpu.memory_space<vmem>>, vector<48x1xf32>
    %145 = vector.broadcast %144 : vector<48x1xf32> to vector<48x128xf32>
    %146 = arith.addf %143, %145 : vector<48x128xf32>
    %147 = math.tanh %146 : vector<48x128xf32>
    %c0_70 = arith.constant 0 : index
    %c0_71 = arith.constant 0 : index
    %c0_72 = arith.constant 0 : index
    %148 = vector.load %arg13[%c0_70, %c0_71, %c0_72] : memref<1x48x128xf32, #tpu.memory_space<vmem>>, vector<1x48x128xf32>
    %149 = vector.shape_cast %148 : vector<1x48x128xf32> to vector<48x128xf32>
    %150 = vector.shape_cast %147 : vector<48x128xf32> to vector<1x48x128xf32>
    tpu.vector_store %arg13[%c0_70, %c0_71, %c0_72], %150 {strides = array<i32>} : memref<1x48x128xf32, #tpu.memory_space<vmem>>, vector<1x48x128xf32>,
    return
  }
  func.func @transform_0(%arg0: i32) -> (i32, i32, i32) {
    %c0_i32 = arith.constant 0 : i32
    %c0_i32_0 = arith.constant 0 : i32
    %c0_i32_1 = arith.constant 0 : i32
    return %arg0, %c0_i32, %c0_i32_0 : i32, i32, i32
  }
  func.func @transform_1(%arg0: i32) -> (i32, i32) {
    %c0_i32 = arith.constant 0 : i32
    %c0_i32_0 = arith.constant 0 : i32
    %c0_i32_1 = arith.constant 0 : i32
    return %c0_i32, %c0_i32_0 : i32, i32
  }
  func.func @transform_2(%arg0: i32) -> (i32, i32) {
    %c0_i32 = arith.constant 0 : i32
    %c0_i32_0 = arith.constant 0 : i32
    %c0_i32_1 = arith.constant 0 : i32
    return %c0_i32, %c0_i32_0 : i32, i32
  }
  func.func @transform_3(%arg0: i32) -> (i32, i32) {
    %c0_i32 = arith.constant 0 : i32
    %c0_i32_0 = arith.constant 0 : i32
    %c0_i32_1 = arith.constant 0 : i32
    return %c0_i32, %c0_i32_0 : i32, i32
  }
  func.func @transform_4(%arg0: i32) -> (i32, i32, i32) {
    %c0_i32 = arith.constant 0 : i32
    %c0_i32_0 = arith.constant 0 : i32
    %c0_i32_1 = arith.constant 0 : i32
    %c0_i32_2 = arith.constant 0 : i32
    return %c0_i32, %c0_i32_0, %c0_i32_1 : i32, i32, i32
  }
  func.func @transform_5(%arg0: i32) -> (i32, i32, i32) {
    %c0_i32 = arith.constant 0 : i32
    %c0_i32_0 = arith.constant 0 : i32
    %c0_i32_1 = arith.constant 0 : i32
    %c0_i32_2 = arith.constant 0 : i32
    return %c0_i32, %c0_i32_0, %c0_i32_1 : i32, i32, i32
  }
  func.func @transform_6(%arg0: i32) -> (i32, i32) {
    %c0_i32 = arith.constant 0 : i32
    %c0_i32_0 = arith.constant 0 : i32
    %c0_i32_1 = arith.constant 0 : i32
    return %c0_i32, %c0_i32_0 : i32, i32
  }
  func.func @transform_7(%arg0: i32) -> (i32, i32) {
    %c0_i32 = arith.constant 0 : i32
    %c0_i32_0 = arith.constant 0 : i32
    %c0_i32_1 = arith.constant 0 : i32
    return %c0_i32, %c0_i32_0 : i32, i32
  }
  func.func @transform_8(%arg0: i32) -> (i32, i32) {
    %c0_i32 = arith.constant 0 : i32
    %c0_i32_0 = arith.constant 0 : i32
    %c0_i32_1 = arith.constant 0 : i32
    return %c0_i32, %c0_i32_0 : i32, i32
  }
  func.func @transform_9(%arg0: i32) -> (i32, i32) {
    %c0_i32 = arith.constant 0 : i32
    %c0_i32_0 = arith.constant 0 : i32
    %c0_i32_1 = arith.constant 0 : i32
    return %c0_i32, %c0_i32_0 : i32, i32
  }
  func.func @transform_10(%arg0: i32) -> (i32, i32) {
    %c0_i32 = arith.constant 0 : i32
    %c0_i32_0 = arith.constant 0 : i32
    %c0_i32_1 = arith.constant 0 : i32
    return %c0_i32, %c0_i32_0 : i32, i32
  }
  func.func @transform_11(%arg0: i32) -> (i32, i32) {
    %c0_i32 = arith.constant 0 : i32
    %c0_i32_0 = arith.constant 0 : i32
    %c0_i32_1 = arith.constant 0 : i32
    return %c0_i32, %c0_i32_0 : i32, i32
  }
  func.func @transform_12(%arg0: i32) -> (i32, i32, i32) {
    %c0_i32 = arith.constant 0 : i32
    %c0_i32_0 = arith.constant 0 : i32
    %c0_i32_1 = arith.constant 0 : i32
    return %arg0, %c0_i32, %c0_i32_0 : i32, i32, i32
  }
}

</mosaic_0001>

<llo_original>
// kernel: decoder_forward_pallas.1
$region0: #{decoder_forward_pallas.1}
  #allocation0 [shape = 'u32[]', space=smem, size = 0x4, offset = 0x4, fixed_abs, tag = 'smem constant byte address 0x4 - core index']
  #allocation1 [shape = 'u32[144,128]{1,0:T(1,128)}', space=vmem, size = 0x12000, scoped, tag = 'internal scratch']
  #allocation2 [shape = 'bf16[64,256]{1,0:T(16,128)(2,1)}', space=vmem, size = 0x8000, scoped, tag = 'scratch operand']
  %s0 = inlined_call_operand.vmem [shape: f32[2,16,128], index: 0, kind: input, shape index: {}]
  %s1 = inlined_call_operand.vmem [shape: f32[1,128], index: 1, kind: input, shape index: {}]
  %s2 = inlined_call_operand.vmem [shape: bf16[32,16], index: 2, kind: input, shape index: {}]
  %s3 = inlined_call_operand.vmem [shape: f32[32,1], index: 3, kind: input, shape index: {}]
  %s4 = inlined_call_operand.vmem [shape: bf16[2,32,288], index: 4, kind: input, shape index: {}]
  %s5 = inlined_call_operand.vmem [shape: bf16[2,32,32], index: 5, kind: input, shape index: {}]
  %s6 = inlined_call_operand.vmem [shape: bf16[32,288], index: 6, kind: input, shape index: {}]
  %s7 = inlined_call_operand.vmem [shape: f32[32,1], index: 7, kind: input, shape index: {}]
  %s8 = inlined_call_operand.vmem [shape: bf16[64,288], index: 8, kind: input, shape index: {}]
  %s9 = inlined_call_operand.vmem [shape: f32[64,1], index: 9, kind: input, shape index: {}]
  %s10 = inlined_call_operand.vmem [shape: bf16[48,256], index: 10, kind: input, shape index: {}]
  %s11 = inlined_call_operand.vmem [shape: f32[48,1], index: 11, kind: input, shape index: {}]
  %s12 = inlined_call_operand.vmem [shape: f32[2,48,128], index: 12, kind: output, shape index: {}]
  %s13 = sld [smem:[#allocation0]]
  $region81: #{decoder_forward_pallas.1} parent=0
    _
  %s15 = ssub.s32 1, %s13
  %s16 = scalar_select 0, %s15, %s13
  loop: start=0, step=1, limit=4
  $region2: #{decoder_forward_pallas.1} parent=0 // loop_pre_header
    _
  $region3: #{decoder_forward_pallas.1} parent=0 // loop_header
    %s18 = sphi 0, %s22
    %p19 = scmp.ge.s32.totalorder %s18, 4
    %s28 = sphi 0, %s30
    %s31 = sphi 0, %s28
    %s32 = sphi 0, %s31
    %s48 = sphi 0, %s32
    %s52 = sphi 0, %s52
    %s54 = sphi 0, %s52
    %s55 = sphi 0, %s54
    %s69 = sphi 0, %s55
    %s73 = sphi 0, %s73
    %s75 = sphi 0, %s73
    %s76 = sphi 0, %s75
    %s90 = sphi 0, %s76
    %s94 = sphi 0, %s94
    %s96 = sphi 0, %s94
    %s97 = sphi 0, %s96
    %s111 = sphi 0, %s97
    %s115 = sphi 0, %s115
    %s117 = sphi 0, %s115
    %s118 = sphi 0, %s117
    %s132 = sphi 0, %s118
    %s136 = sphi 0, %s136
    %s138 = sphi 0, %s136
    %s139 = sphi 0, %s138
    %s153 = sphi 0, %s139
    %s157 = sphi 0, %s157
    %s159 = sphi 0, %s157
    %s160 = sphi 0, %s159
    %s174 = sphi 0, %s160
    %s178 = sphi 0, %s178
    %s180 = sphi 0, %s178
    %s181 = sphi 0, %s180
    %s195 = sphi 0, %s181
    %s199 = sphi 0, %s199
    %s201 = sphi 0, %s199
    %s202 = sphi 0, %s201
    %s216 = sphi 0, %s202
    %s220 = sphi 0, %s220
    %s222 = sphi 0, %s220
    %s223 = sphi 0, %s222
    %s237 = sphi 0, %s223
    %s241 = sphi 0, %s241
    %s243 = sphi 0, %s241
    %s244 = sphi 0, %s243
    %s258 = sphi 0, %s244
    %s262 = sphi 0, %s262
    %s264 = sphi 0, %s262
    %s265 = sphi 0, %s264
    %s279 = sphi 0, %s265
    %s285 = sphi 0, %s287
    %s288 = sphi 0, %s285
    %s289 = sphi 0, %s288
    %s305 = sphi 0, %s289
  $region4: #{decoder_forward_pallas.1} parent=0 // loop_header_branch
    %21 = sbr.rel (%p19) target = $region8
  $region5: #{decoder_forward_pallas.1} parent=0 // loop_body
    %s23 = ssub.s32 %s18, 1
    %s24 = ssub.s32 %s18, 2
    %s25 = sadd.s32 %s18, 1
    %s26 = ssub.s32 %s18, %s25
    %p27 = scmp.eq.s32.totalorder %s26, 0
    %s29 = sadd.s32 %s28, 1
    %s30 = scalar_select %p27, %s28, %s29
    %p33 = pneg %p27
    %p34 = scmp.eq.s32.totalorder %s18, 1
    %p35 = por %p33, %p34
    %p36 = scmp.ne.s32.totalorder %s28, %s31
    %p37 = scmp.eq.s32.totalorder %s18, 0
    %p38 = por %p36, %p37
    %p39 = scmp.ne.s32.totalorder %s28, %s31
    %p40 = scmp.eq.s32.totalorder %s23, 1
    %p41 = por %p39, %p40
    %p42 = scmp.ne.s32.totalorder %s31, %s32
    %p43 = scmp.eq.s32.totalorder %s23, 0
    %p44 = por %p42, %p43
    %p45 = scmp.ne.s32.totalorder %s31, %s32
    %p46 = scmp.eq.s32.totalorder %s24, 1
    %p47 = por %p45, %p46
    %p49 = scmp.ne.s32.totalorder %s32, %s48
    %p50 = scmp.eq.s32.totalorder %s24, 0
    %p51 = por %p49, %p50
    %s53 = sadd.s32 %s52, 1
    %p56 = scmp.eq.s32.totalorder %s18, 1
    %p57 = scmp.ne.s32.totalorder %s52, %s54
    %p58 = scmp.eq.s32.totalorder %s18, 0
    %p59 = por %p57, %p58
    %p60 = scmp.ne.s32.totalorder %s52, %s54
    %p61 = scmp.eq.s32.totalorder %s23, 1
    %p62 = por %p60, %p61
    %p63 = scmp.ne.s32.totalorder %s54, %s55
    %p64 = scmp.eq.s32.totalorder %s23, 0
    %p65 = por %p63, %p64
    %p66 = scmp.ne.s32.totalorder %s54, %s55
    %p67 = scmp.eq.s32.totalorder %s24, 1
    %p68 = por %p66, %p67
    %p70 = scmp.ne.s32.totalorder %s55, %s69
    %p71 = scmp.eq.s32.totalorder %s24, 0
    %p72 = por %p70, %p71
    %s74 = sadd.s32 %s73, 1
    %p77 = scmp.eq.s32.totalorder %s18, 1
    %p78 = scmp.ne.s32.totalorder %s73, %s75
    %p79 = scmp.eq.s32.totalorder %s18, 0
    %p80 = por %p78, %p79
    %p81 = scmp.ne.s32.totalorder %s73, %s75
    %p82 = scmp.eq.s32.totalorder %s23, 1
    %p83 = por %p81, %p82
    %p84 = scmp.ne.s32.totalorder %s75, %s76
    %p85 = scmp.eq.s32.totalorder %s23, 0
    %p86 = por %p84, %p85
    %p87 = scmp.ne.s32.totalorder %s75, %s76
    %p88 = scmp.eq.s32.totalorder %s24, 1
    %p89 = por %p87, %p88
    %p91 = scmp.ne.s32.totalorder %s76, %s90
    %p92 = scmp.eq.s32.totalorder %s24, 0
    %p93 = por %p91, %p92
    %s95 = sadd.s32 %s94, 1
    %p98 = scmp.eq.s32.totalorder %s18, 1
    %p99 = scmp.ne.s32.totalorder %s94, %s96
    %p100 = scmp.eq.s32.totalorder %s18, 0
    %p101 = por %p99, %p100
    %p102 = scmp.ne.s32.totalorder %s94, %s96
    %p103 = scmp.eq.s32.totalorder %s23, 1
    %p104 = por %p102, %p103
    %p105 = scmp.ne.s32.totalorder %s96, %s97
    %p106 = scmp.eq.s32.totalorder %s23, 0
    %p107 = por %p105, %p106
    %p108 = scmp.ne.s32.totalorder %s96, %s97
    %p109 = scmp.eq.s32.totalorder %s24, 1
    %p110 = por %p108, %p109
    %p112 = scmp.ne.s32.totalorder %s97, %s111
    %p113 = scmp.eq.s32.totalorder %s24, 0
    %p114 = por %p112, %p113
    %s116 = sadd.s32 %s115, 1
    %p119 = scmp.eq.s32.totalorder %s18, 1
    %p120 = scmp.ne.s32.totalorder %s115, %s117
    %p121 = scmp.eq.s32.totalorder %s18, 0
    %p122 = por %p120, %p121
    %p123 = scmp.ne.s32.totalorder %s115, %s117
    %p124 = scmp.eq.s32.totalorder %s23, 1
    %p125 = por %p123, %p124
    %p126 = scmp.ne.s32.totalorder %s117, %s118
    %p127 = scmp.eq.s32.totalorder %s23, 0
    %p128 = por %p126, %p127
    %p129 = scmp.ne.s32.totalorder %s117, %s118
    %p130 = scmp.eq.s32.totalorder %s24, 1
    %p131 = por %p129, %p130
    %p133 = scmp.ne.s32.totalorder %s118, %s132
    %p134 = scmp.eq.s32.totalorder %s24, 0
    %p135 = por %p133, %p134
    %s137 = sadd.s32 %s136, 1
    %p140 = scmp.eq.s32.totalorder %s18, 1
    %p141 = scmp.ne.s32.totalorder %s136, %s138
    %p142 = scmp.eq.s32.totalorder %s18, 0
    %p143 = por %p141, %p142
    %p144 = scmp.ne.s32.totalorder %s136, %s138
    %p145 = scmp.eq.s32.totalorder %s23, 1
    %p146 = por %p144, %p145
    %p147 = scmp.ne.s32.totalorder %s138, %s139
    %p148 = scmp.eq.s32.totalorder %s23, 0
    %p149 = por %p147, %p148
    %p150 = scmp.ne.s32.totalorder %s138, %s139
    %p151 = scmp.eq.s32.totalorder %s24, 1
    %p152 = por %p150, %p151
    %p154 = scmp.ne.s32.totalorder %s139, %s153
    %p155 = scmp.eq.s32.totalorder %s24, 0
    %p156 = por %p154, %p155
    %s158 = sadd.s32 %s157, 1
    %p161 = scmp.eq.s32.totalorder %s18, 1
    %p162 = scmp.ne.s32.totalorder %s157, %s159
    %p163 = scmp.eq.s32.totalorder %s18, 0
    %p164 = por %p162, %p163
    %p165 = scmp.ne.s32.totalorder %s157, %s159
    %p166 = scmp.eq.s32.totalorder %s23, 1
    %p167 = por %p165, %p166
    %p168 = scmp.ne.s32.totalorder %s159, %s160
    %p169 = scmp.eq.s32.totalorder %s23, 0
    %p170 = por %p168, %p169
    %p171 = scmp.ne.s32.totalorder %s159, %s160
    %p172 = scmp.eq.s32.totalorder %s24, 1
    %p173 = por %p171, %p172
    %p175 = scmp.ne.s32.totalorder %s160, %s174
    %p176 = scmp.eq.s32.totalorder %s24, 0
    %p177 = por %p175, %p176
    %s179 = sadd.s32 %s178, 1
    %p182 = scmp.eq.s32.totalorder %s18, 1
    %p183 = scmp.ne.s32.totalorder %s178, %s180
    %p184 = scmp.eq.s32.totalorder %s18, 0
    %p185 = por %p183, %p184
    %p186 = scmp.ne.s32.totalorder %s178, %s180
    %p187 = scmp.eq.s32.totalorder %s23, 1
    %p188 = por %p186, %p187
    %p189 = scmp.ne.s32.totalorder %s180, %s181
    %p190 = scmp.eq.s32.totalorder %s23, 0
    %p191 = por %p189, %p190
    %p192 = scmp.ne.s32.totalorder %s180, %s181
    %p193 = scmp.eq.s32.totalorder %s24, 1
    %p194 = por %p192, %p193
    %p196 = scmp.ne.s32.totalorder %s181, %s195
    %p197 = scmp.eq.s32.totalorder %s24, 0
    %p198 = por %p196, %p197
    %s200 = sadd.s32 %s199, 1
    %p203 = scmp.eq.s32.totalorder %s18, 1
    %p204 = scmp.ne.s32.totalorder %s199, %s201
    %p205 = scmp.eq.s32.totalorder %s18, 0
    %p206 = por %p204, %p205
    %p207 = scmp.ne.s32.totalorder %s199, %s201
    %p208 = scmp.eq.s32.totalorder %s23, 1
    %p209 = por %p207, %p208
    %p210 = scmp.ne.s32.totalorder %s201, %s202
    %p211 = scmp.eq.s32.totalorder %s23, 0
    %p212 = por %p210, %p211
    %p213 = scmp.ne.s32.totalorder %s201, %s202
    %p214 = scmp.eq.s32.totalorder %s24, 1
    %p215 = por %p213, %p214
    %p217 = scmp.ne.s32.totalorder %s202, %s216
    %p218 = scmp.eq.s32.totalorder %s24, 0
    %p219 = por %p217, %p218
    %s221 = sadd.s32 %s220, 1
    %p224 = scmp.eq.s32.totalorder %s18, 1
    %p225 = scmp.ne.s32.totalorder %s220, %s222
    %p226 = scmp.eq.s32.totalorder %s18, 0
    %p227 = por %p225, %p226
    %p228 = scmp.ne.s32.totalorder %s220, %s222
    %p229 = scmp.eq.s32.totalorder %s23, 1
    %p230 = por %p228, %p229
    %p231 = scmp.ne.s32.totalorder %s222, %s223
    %p232 = scmp.eq.s32.totalorder %s23, 0
    %p233 = por %p231, %p232
    %p234 = scmp.ne.s32.totalorder %s222, %s223
    %p235 = scmp.eq.s32.totalorder %s24, 1
    %p236 = por %p234, %p235
    %p238 = scmp.ne.s32.totalorder %s223, %s237
    %p239 = scmp.eq.s32.totalorder %s24, 0
    %p240 = por %p238, %p239
    %s242 = sadd.s32 %s241, 1
    %p245 = scmp.eq.s32.totalorder %s18, 1
    %p246 = scmp.ne.s32.totalorder %s241, %s243
    %p247 = scmp.eq.s32.totalorder %s18, 0
    %p248 = por %p246, %p247
    %p249 = scmp.ne.s32.totalorder %s241, %s243
    %p250 = scmp.eq.s32.totalorder %s23, 1
    %p251 = por %p249, %p250
    %p252 = scmp.ne.s32.totalorder %s243, %s244
    %p253 = scmp.eq.s32.totalorder %s23, 0
    %p254 = por %p252, %p253
    %p255 = scmp.ne.s32.totalorder %s243, %s244
    %p256 = scmp.eq.s32.totalorder %s24, 1
    %p257 = por %p255, %p256
    %p259 = scmp.ne.s32.totalorder %s244, %s258
    %p260 = scmp.eq.s32.totalorder %s24, 0
    %p261 = por %p259, %p260
    %s263 = sadd.s32 %s262, 1
    %p266 = scmp.eq.s32.totalorder %s18, 1
    %p267 = scmp.ne.s32.totalorder %s262, %s264
    %p268 = scmp.eq.s32.totalorder %s18, 0
    %p269 = por %p267, %p268
    %p270 = scmp.ne.s32.totalorder %s262, %s264
    %p271 = scmp.eq.s32.totalorder %s23, 1
    %p272 = por %p270, %p271
    %p273 = scmp.ne.s32.totalorder %s264, %s265
    %p274 = scmp.eq.s32.totalorder %s23, 0
    %p275 = por %p273, %p274
    %p276 = scmp.ne.s32.totalorder %s264, %s265
    %p277 = scmp.eq.s32.totalorder %s24, 1
    %p278 = por %p276, %p277
    %p280 = scmp.ne.s32.totalorder %s265, %s279
    %p281 = scmp.eq.s32.totalorder %s24, 0
    %p282 = por %p280, %p281
    %s283 = ssub.s32 %s18, %s25
    %p284 = scmp.eq.s32.totalorder %s283, 0
    %s286 = sadd.s32 %s285, 1
    %s287 = scalar_select %p284, %s285, %s286
    %p290 = pneg %p284
    %p291 = scmp.eq.s32.totalorder %s18, 1
    %p292 = por %p290, %p291
    %p293 = scmp.ne.s32.totalorder %s285, %s288
    %p294 = scmp.eq.s32.totalorder %s18, 0
    %p295 = por %p293, %p294
    %p296 = scmp.ne.s32.totalorder %s285, %s288
    %p297 = scmp.eq.s32.totalorder %s23, 1
    %p298 = por %p296, %p297
    %p299 = scmp.ne.s32.totalorder %s288, %s289
    %p300 = scmp.eq.s32.totalorder %s23, 0
    %p301 = por %p299, %p300
    %p302 = scmp.ne.s32.totalorder %s288, %s289
    %p303 = scmp.eq.s32.totalorder %s24, 1
    %p304 = por %p302, %p303
    %p306 = scmp.ne.s32.totalorder %s289, %s305
    %p307 = scmp.eq.s32.totalorder %s24, 0
    %p308 = por %p306, %p307
    %p309 = scmp.le.s32.totalorder 1, %s18
    %p310 = scmp.lt.s32.totalorder %s18, 3
    %p311 = pnand %p309, %p310
    %p312 = pneg %p311
    // Predicated region
    $region9: #{decoder_forward_pallas.1} parent=5 // pred_check
      _
    $region10: #{decoder_forward_pallas.1} parent=5 // pred_check_branch
      %314 = sbr.rel (%p311) target = $region12
    $region11: #{decoder_forward_pallas.1} parent=5 // pred_region
      %s315 = ssub.s32 %s18, 1
      // Predicated region
      $region13: #{decoder_forward_pallas.1} parent=11 // pred_check
        %p316 = pneg %p65
      $region14: #{decoder_forward_pallas.1} parent=11 // pred_check_branch
        %318 = sbr.rel (%p316) target = $region16
      $region15: #{decoder_forward_pallas.1} parent=11 // pred_region
        _
      $region16: #{decoder_forward_pallas.1} parent=11 // pred_fallthru
        _
      // Predicated region
      $region17: #{decoder_forward_pallas.1} parent=11 // pred_check
        %p319 = pneg %p86
      $region18: #{decoder_forward_pallas.1} parent=11 // pred_check_branch
        %321 = sbr.rel (%p319) target = $region20
      $region19: #{decoder_forward_pallas.1} parent=11 // pred_region
        _
      $region20: #{decoder_forward_pallas.1} parent=11 // pred_fallthru
        _
      // Predicated region
      $region21: #{decoder_forward_pallas.1} parent=11 // pred_check
        %p322 = pneg %p107
      $region22: #{decoder_forward_pallas.1} parent=11 // pred_check_branch
        %324 = sbr.rel (%p322) target = $region24
      $region23: #{decoder_forward_pallas.1} parent=11 // pred_region
        _
      $region24: #{decoder_forward_pallas.1} parent=11 // pred_fallthru
        _
      // Predicated region
      $region25: #{decoder_forward_pallas.1} parent=11 // pred_check
        %p325 = pneg %p128
      $region26: #{decoder_forward_pallas.1} parent=11 // pred_check_branch
        %327 = sbr.rel (%p325) target = $region28
      $region27: #{decoder_forward_pallas.1} parent=11 // pred_region
        _
      $region28: #{decoder_forward_pallas.1} parent=11 // pred_fallthru
        _
      // Predicated region
      $region29: #{decoder_forward_pallas.1} parent=11 // pred_check
        %p328 = pneg %p149
      $region30: #{decoder_forward_pallas.1} parent=11 // pred_check_branch
        %330 = sbr.rel (%p328) target = $region32
      $region31: #{decoder_forward_pallas.1} parent=11 // pred_region
        _
      $region32: #{decoder_forward_pallas.1} parent=11 // pred_fallthru
        _
      // Predicated region
      $region33: #{decoder_forward_pallas.1} parent=11 // pred_check
        %p331 = pneg %p170
      $region34: #{decoder_forward_pallas.1} parent=11 // pred_check_branch
        %333 = sbr.rel (%p331) target = $region36
      $region35: #{decoder_forward_pallas.1} parent=11 // pred_region
        _
      $region36: #{decoder_forward_pallas.1} parent=11 // pred_fallthru
        _
      // Predicated region
      $region37: #{decoder_forward_pallas.1} parent=11 // pred_check
        %p334 = pneg %p191
      $region38: #{decoder_forward_pallas.1} parent=11 // pred_check_branch
        %336 = sbr.rel (%p334) target = $region40
      $region39: #{decoder_forward_pallas.1} parent=11 // pred_region
        _
      $region40: #{decoder_forward_pallas.1} parent=11 // pred_fallthru
        _
      // Predicated region
      $region41: #{decoder_forward_pallas.1} parent=11 // pred_check
        %p337 = pneg %p212
      $region42: #{decoder_forward_pallas.1} parent=11 // pred_check_branch
        %339 = sbr.rel (%p337) target = $region44
      $region43: #{decoder_forward_pallas.1} parent=11 // pred_region
        _
      $region44: #{decoder_forward_pallas.1} parent=11 // pred_fallthru
        _
      // Predicated region
      $region45: #{decoder_forward_pallas.1} parent=11 // pred_check
        %p340 = pneg %p233
      $region46: #{decoder_forward_pallas.1} parent=11 // pred_check_branch
        %342 = sbr.rel (%p340) target = $region48
      $region47: #{decoder_forward_pallas.1} parent=11 // pred_region
        _
      $region48: #{decoder_forward_pallas.1} parent=11 // pred_fallthru
        _
      // Predicated region
      $region49: #{decoder_forward_pallas.1} parent=11 // pred_check
        %p343 = pneg %p254
      $region50: #{decoder_forward_pallas.1} parent=11 // pred_check_branch
        %345 = sbr.rel (%p343) target = $region52
      $region51: #{decoder_forward_pallas.1} parent=11 // pred_region
        _
      $region52: #{decoder_forward_pallas.1} parent=11 // pred_fallthru
        _
      // Predicated region
      $region53: #{decoder_forward_pallas.1} parent=11 // pred_check
        %p346 = pneg %p275
      $region54: #{decoder_forward_pallas.1} parent=11 // pred_check_branch
        %348 = sbr.rel (%p346) target = $region56
      $region55: #{decoder_forward_pallas.1} parent=11 // pred_region
        _
      $region56: #{decoder_forward_pallas.1} parent=11 // pred_fallthru
        _
    $region12: #{decoder_forward_pallas.1} parent=5 // pred_fallthru
      _
    %p349 = scmp.lt.s32.totalorder %s18, 2
    // Predicated region
    $region57: #{decoder_forward_pallas.1} parent=5 // pred_check
      %p350 = pneg %p349
    $region58: #{decoder_forward_pallas.1} parent=5 // pred_check_branch
      %352 = sbr.rel (%p350) target = $region60
    $region59: #{decoder_forward_pallas.1} parent=5 // pred_region
      // Predicated region
      $region61: #{decoder_forward_pallas.1} parent=59 // pred_check
        %p353 = pneg %p38
      $region62: #{decoder_forward_pallas.1} parent=59 // pred_check_branch
        %355 = sbr.rel (%p353) target = $region64
      $region63: #{decoder_forward_pallas.1} parent=59 // pred_region
        %p356 = scmp.lt.s32.totalorder %s18, 1
        %s357 = scalar_select %p356, %s18, 1
        %s358 = smul.addr %s357, 2
        %s359 = smul.addr %s358, 8
        %s360 = scalar_lea.vmem %s0, %s359
      $region64: #{decoder_forward_pallas.1} parent=59 // pred_fallthru
        _
    $region60: #{decoder_forward_pallas.1} parent=5 // pred_fallthru
      _
    %p361 = scmp.le.s32.totalorder 1, %s18
    %p362 = scmp.lt.s32.totalorder %s18, 3
    %p363 = pnand %p361, %p362
    %p364 = pneg %p363
    // Predicated region
    $region65: #{decoder_forward_pallas.1} parent=5 // pred_check
      _
    $region66: #{decoder_forward_pallas.1} parent=5 // pred_check_branch
      %366 = sbr.rel (%p363) target = $region68
    $region67: #{decoder_forward_pallas.1} parent=5 // pred_region
      %s367 = ssub.s32 %s18, 1
      %p368 = scmp.lt.s32.totalorder %s23, 1
      %s369 = scalar_select %p368, %s23, 1
      %s370 = smul.addr %s369, 2
      %s371 = smul.addr %s370, 8
      %s372 = scalar_lea.vmem %s0, %s371
      %p373 = pneg %p44
      %p374 = pneg %p41
      %p375 = pneg %p65
      %p376 = pneg %p62
      %p377 = pneg %p86
      %p378 = pneg %p83
      %p379 = pneg %p107
      %p380 = pneg %p104
      %p381 = pneg %p128
      %p382 = pneg %p125
      %p383 = pneg %p149
      %p384 = pneg %p146
      %p385 = pneg %p170
      %p386 = pneg %p167
      %p387 = pneg %p191
      %p388 = pneg %p188
      %p389 = pneg %p212
      %p390 = pneg %p209
      %p391 = pneg %p233
      %p392 = pneg %p230
      %p393 = pneg %p254
      %p394 = pneg %p251
      %p395 = pneg %p275
      %p396 = pneg %p272
      %p397 = pneg %p301
      %p398 = pneg %p298
      %p399 = scmp.lt.s32.totalorder %s23, 1
      %s400 = scalar_select %p399, %s23, 1
      %s401 = smul.addr %s400, 6
      %s402 = smul.addr %s401, 8
      %s403 = scalar_lea.vmem %s12, %s402
      %p404 = scmp.lt.s32.totalorder %s23, 1
      %s405 = scalar_select %p404, %s23, 1
      %s406 = smul.addr %s405, 2
      %s407 = smul.addr %s406, 8
      %s408 = scalar_lea.vmem %s0, %s407
      %p409 = scmp.lt.s32.totalorder %s23, 1
      %s410 = scalar_select %p409, %s23, 1
      %s411 = smul.addr %s410, 6
      %s412 = smul.addr %s411, 8
      %s413 = scalar_lea.vmem %s12, %s412
      %v415 = vld [vmem:[%s1] sm:$0x1]
      %416 = vst [vmem:[#allocation2] sm:$0xff] 0
      %417 = vst [vmem:[#allocation2 + $0x8] sm:$0xff] 0
      %418 = vst [vmem:[#allocation2 + $0x10] sm:$0xff] 0
      %419 = vst [vmem:[#allocation2 + $0x18] sm:$0xff] 0
      %420 = vst [vmem:[#allocation2 + $0x20] sm:$0xff] 0
      %421 = vst [vmem:[#allocation2 + $0x28] sm:$0xff] 0
      %422 = vst [vmem:[#allocation2 + $0x30] sm:$0xff] 0
      %423 = vst [vmem:[#allocation2 + $0x38] sm:$0xff] 0
      %v424 = vld [vmem:[%s2] sm:$0xf]
      %v425 = vld [vmem:[%s2 + $0x4] sm:$0xf]
      %v426 = vld [vmem:[%s2 + $0x8] sm:$0xf]
      %v427 = vld [vmem:[%s2 + $0xc] sm:$0xf]
      %v428 = vld [vmem:[%s408] sm:$0xff]
      %v429 = vld [vmem:[%s408 + $0x8] sm:$0xff]
      %v430 = vpack.c.bf16 %v429, %v428
      %v431 = vld [vmem:[%s3] sm:$0xff]
      %v432 = vld [vmem:[%s3 + $0x8] sm:$0xff]
      %v433 = vld [vmem:[%s3 + $0x10] sm:$0xff]
      %v434 = vld [vmem:[%s3 + $0x18] sm:$0xff]
      %436 = vset.pattern.permute.xlu0 0
      %437 = vperm.xlu0 %436, %v431
      %v438 = vpop.permute.xlu0 %437
      %441 = vset.pattern.permute.xlu0 0
      %442 = vperm.xlu0 %441, %v432
      %v443 = vpop.permute.xlu0 %442
      %446 = vset.pattern.permute.xlu0 0
      %447 = vperm.xlu0 %446, %v433
      %v448 = vpop.permute.xlu0 %447
      %451 = vset.pattern.permute.xlu0 0
      %452 = vperm.xlu0 %451, %v434
      %v453 = vpop.permute.xlu0 %452
      %v459 = vunpack.c.l.b16 %v424
      %v460 = vunpack.c.l.b16 %v425
      %v461 = vunpack.c.l.b16 %v426
      %v462 = vunpack.c.l.b16 %v427
      %v463 = vpack.c.b16 %v460, %v459
      %v464 = vpack.c.b16 %v462, %v461
      %vm465 = vcmask 130048
      %v467 = vsel %vm465, %v463, 0
      %v470 = vsel %vm465, %v464, 0
      %472 = vmatprep.subr.bf16.mxu0 0
      %473 = vmatpush1.bf16.msra.mxu0 %v430
      %474 = vmatprep.subr.bf16.mxu0 0
      %475 = vmatpush1.bf16.msra.mxu0 0
      %476 = vmatprep.subr.bf16.mxu0 0
      %477 = vmatpush1.bf16.msra.mxu0 0
      %478 = vmatprep.subr.bf16.mxu0 0
      %479 = vmatpush1.bf16.msra.mxu0 0
      %480 = vmatprep.subr.bf16.mxu0 0
      %481 = vmatpush1.bf16.msra.mxu0 0
      %482 = vmatprep.subr.bf16.mxu0 0
      %483 = vmatpush1.bf16.msra.mxu0 0
      %484 = vmatprep.subr.bf16.mxu0 0
      %485 = vmatpush1.bf16.msra.mxu0 0
      %486 = vmatprep.subr.bf16.mxu0 0
      %487 = vmatpush1.bf16.msra.mxu0 0
      %488 = vmatprep.subr.bf16.mxu0 0
      %489 = vmatpush1.bf16.msra.mxu0 0
      %490 = vmatprep.subr.bf16.mxu0 0
      %491 = vmatpush1.bf16.msra.mxu0 0
      %492 = vmatprep.subr.bf16.mxu0 0
      %493 = vmatpush1.bf16.msra.mxu0 0
      %494 = vmatprep.subr.bf16.mxu0 0
      %495 = vmatpush1.bf16.msra.mxu0 0
      %496 = vmatprep.subr.bf16.mxu0 0
      %497 = vmatpush1.bf16.msra.mxu0 0
      %498 = vmatprep.subr.bf16.mxu0 0
      %499 = vmatpush1.bf16.msra.mxu0 0
      %500 = vmatprep.subr.bf16.mxu0 0
      %501 = vmatpush1.bf16.msra.mxu0 0
      %502 = vmatprep.subr.bf16.mxu0 0
      %503 = vmatpush1.bf16.msra.mxu0 0
      %504 = vmatprep.mubr.bf16.mxu0 0
      %505 = vmatmul.mubr.bf16.gmra.mrb[0].mxu0 %v467
      %v506 = vpop.f32.mrb[0].mxu0
      %v507 = vadd.f32 %v438, %v506
      %v508 = vpop.f32.mrb[0].mxu0
      %v509 = vpop.f32.mrb[0].mxu0
      %v510 = vadd.f32 %v443, %v509
      %v511 = vpop.f32.mrb[0].mxu0
      %512 = vmatprep.mubr.bf16.mxu0 0
      %513 = vmatmul.mubr.bf16.gmra.mrb[0].mxu0 %v470
      %v514 = vpop.f32.mrb[0].mxu0
      %v515 = vadd.f32 %v448, %v514
      %v516 = vpop.f32.mrb[0].mxu0
      %v517 = vpop.f32.mrb[0].mxu0
      %v518 = vadd.f32 %v453, %v517
      %v519 = vpop.f32.mrb[0].mxu0
      %520 = vdwg.mxu0
      %v521 = vmax.f32 %v507, 0.0
      %v522 = vmax.f32 %v510, 0.0
      %v523 = vmax.f32 %v515, 0.0
      %v524 = vmax.f32 %v518, 0.0
      %v526 = vlaneseq
      %v527 = vshrl.u32 %v526, 7
      %v528 = vsub.s32 0, %v527
      %v529 = vrot.slane %v415, %v528
      %v531 = vmul.f32 %v521, %v529
      %v532 = vmul.f32 %v522, %v529
      %v533 = vmul.f32 %v523, %v529
      %v534 = vmul.f32 %v524, %v529
      %v535 = vpack.c.bf16 %v532, %v531
      %v536 = vpack.c.bf16 %v534, %v533
      %539 = vrot.lane.b32.xlu0 %v535, 11
      %v540 = vpop.permute.xlu0 %539
      %541 = vrot.lane.b32.xlu0 %v536, 11
      %v542 = vpop.permute.xlu0 %541
      %vm545 = vcmask 1047640
      %546 = vst.msk [vmem:[#allocation2] sm:$0xff] %vm545, %v540
      %vm547 = vcmask 89088
      %548 = vst.msk [vmem:[#allocation2 + $0x8] sm:$0xff] %vm547, %v540
      %549 = vst.msk [vmem:[#allocation2 + $0x10] sm:$0xff] %vm545, %v542
      %550 = vst.msk [vmem:[#allocation2 + $0x18] sm:$0xff] %vm547, %v542
      %v551 = vld [vmem:[#allocation2] sm:$0xff]
      %v552 = vld [vmem:[#allocation2 + $0x8] sm:$0xff]
      %v553 = vld [vmem:[#allocation2 + $0x10] sm:$0xff]
      %v554 = vld [vmem:[#allocation2 + $0x18] sm:$0xff]
      %559 = vrot.lane.b32.xlu0 %v551, 127
      %v560 = vpop.permute.xlu0 %559
      %561 = vrot.lane.b32.xlu0 %v552, 127
      %v562 = vpop.permute.xlu0 %561
      %563 = vrot.lane.b32.xlu0 %v553, 127
      %v564 = vpop.permute.xlu0 %563
      %565 = vrot.lane.b32.xlu0 %v554, 127
      %v566 = vpop.permute.xlu0 %565
      %vm567 = vcmask 1039360
      %v568 = vsel %vm567, %v560, %v562
      %v569 = vsel %vm567, %v564, %v566
      %572 = vrot.lane.b32.xlu0 %v551, 126
      %v573 = vpop.permute.xlu0 %572
      %574 = vrot.lane.b32.xlu0 %v552, 126
      %v575 = vpop.permute.xlu0 %574
      %576 = vrot.lane.b32.xlu0 %v553, 126
      %v577 = vpop.permute.xlu0 %576
      %578 = vrot.lane.b32.xlu0 %v554, 126
      %v579 = vpop.permute.xlu0 %578
      %vm580 = vcmask 1031168
      %v581 = vsel %vm580, %v573, %v575
      %v582 = vsel %vm580, %v577, %v579
      %585 = vrot.lane.b32.xlu0 %v551, 118
      %v586 = vpop.permute.xlu0 %585
      %587 = vrot.lane.b32.xlu0 %v552, 118
      %v588 = vpop.permute.xlu0 %587
      %589 = vrot.lane.b32.xlu0 %v553, 118
      %v590 = vpop.permute.xlu0 %589
      %591 = vrot.lane.b32.xlu0 %v554, 118
      %v592 = vpop.permute.xlu0 %591
      %vm593 = vcmask 965632
      %v594 = vsel %vm593, %v586, %v588
      %v595 = vsel %vm593, %v590, %v592
      %598 = vrot.lane.b32.xlu0 %v551, 117
      %v599 = vpop.permute.xlu0 %598
      %600 = vrot.lane.b32.xlu0 %v552, 117
      %v601 = vpop.permute.xlu0 %600
      %602 = vrot.lane.b32.xlu0 %v553, 117
      %v603 = vpop.permute.xlu0 %602
      %604 = vrot.lane.b32.xlu0 %v554, 117
      %v605 = vpop.permute.xlu0 %604
      %vm606 = vcmask 957440
      %v607 = vsel %vm606, %v599, %v601
      %v608 = vsel %vm606, %v603, %v605
      %611 = vrot.lane.b32.xlu0 %v551, 116
      %v612 = vpop.permute.xlu0 %611
      %613 = vrot.lane.b32.xlu0 %v552, 116
      %v614 = vpop.permute.xlu0 %613
      %615 = vrot.lane.b32.xlu0 %v553, 116
      %v616 = vpop.permute.xlu0 %615
      %617 = vrot.lane.b32.xlu0 %v554, 116
      %v618 = vpop.permute.xlu0 %617
      %vm619 = vcmask 949248
      %v620 = vsel %vm619, %v612, %v614
      %v621 = vsel %vm619, %v616, %v618
      %624 = vrot.lane.b32.xlu0 %v551, 108
      %v625 = vpop.permute.xlu0 %624
      %626 = vrot.lane.b32.xlu0 %v552, 108
      %v627 = vpop.permute.xlu0 %626
      %628 = vrot.lane.b32.xlu0 %v553, 108
      %v629 = vpop.permute.xlu0 %628
      %630 = vrot.lane.b32.xlu0 %v554, 108
      %v631 = vpop.permute.xlu0 %630
      %vm632 = vcmask 883712
      %v633 = vsel %vm632, %v625, %v627
      %v634 = vsel %vm632, %v629, %v631
      %637 = vrot.lane.b32.xlu0 %v551, 107
      %v638 = vpop.permute.xlu0 %637
      %639 = vrot.lane.b32.xlu0 %v552, 107
      %v640 = vpop.permute.xlu0 %639
      %641 = vrot.lane.b32.xlu0 %v553, 107
      %v642 = vpop.permute.xlu0 %641
      %643 = vrot.lane.b32.xlu0 %v554, 107
      %v644 = vpop.permute.xlu0 %643
      %vm645 = vcmask 875520
      %v646 = vsel %vm645, %v638, %v640
      %v647 = vsel %vm645, %v642, %v644
      %650 = vrot.lane.b32.xlu0 %v551, 106
      %v651 = vpop.permute.xlu0 %650
      %652 = vrot.lane.b32.xlu0 %v552, 106
      %v653 = vpop.permute.xlu0 %652
      %654 = vrot.lane.b32.xlu0 %v553, 106
      %v655 = vpop.permute.xlu0 %654
      %656 = vrot.lane.b32.xlu0 %v554, 106
      %v657 = vpop.permute.xlu0 %656
      %vm658 = vcmask 867328
      %v659 = vsel %vm658, %v651, %v653
      %v660 = vsel %vm658, %v655, %v657
      %v663 = vld [vmem:[%s4] sm:$0xff]
      %v664 = vld [vmem:[%s4 + $0x8] sm:$0xf]
      %v665 = vld [vmem:[%s4 + $0xc] sm:$0xff]
      %v666 = vld [vmem:[%s4 + $0x14] sm:$0xf]
      %v667 = vld [vmem:[%s4 + $0x18] sm:$0xff]
      %v668 = vld [vmem:[%s4 + $0x20] sm:$0xf]
      %v669 = vld [vmem:[%s4 + $0x24] sm:$0xff]
      %v670 = vld [vmem:[%s4 + $0x2c] sm:$0xf]
      %v679 = vunpack.c.l.b16 %v663
      %v680 = vunpack.c.h.b16 %v663
      %v681 = vunpack.c.l.b16 %v664
      %v682 = vunpack.c.l.b16 %v665
      %v683 = vunpack.c.h.b16 %v665
      %v684 = vunpack.c.l.b16 %v666
      %v685 = vunpack.c.l.b16 %v667
      %v686 = vunpack.c.h.b16 %v667
      %v687 = vunpack.c.l.b16 %v668
      %v688 = vunpack.c.l.b16 %v669
      %v689 = vunpack.c.h.b16 %v669
      %v690 = vunpack.c.l.b16 %v670
      %v691 = vpack.c.b16 %v682, %v679
      %v692 = vpack.c.b16 %v683, %v680
      %v693 = vpack.c.b16 %v684, %v681
      %v694 = vpack.c.b16 %v688, %v685
      %v695 = vpack.c.b16 %v689, %v686
      %v696 = vpack.c.b16 %v690, %v687
      %vm701 = vcmask 261120
      %v703 = vsel %vm701, %v693, 0
      %v706 = vsel %vm701, %v696, 0
      %708 = vmatprep.subr.bf16.mxu0 0
      %709 = vmatpush1.bf16.msra.mxu0 %v551
      %710 = vmatprep.subr.bf16.mxu0 0
      %711 = vmatpush1.bf16.msra.mxu0 %v553
      %712 = vmatprep.subr.bf16.mxu0 0
      %713 = vmatpush1.bf16.msra.mxu0 %v568
      %714 = vmatprep.subr.bf16.mxu0 0
      %715 = vmatpush1.bf16.msra.mxu0 %v569
      %716 = vmatprep.subr.bf16.mxu0 0
      %717 = vmatpush1.bf16.msra.mxu0 %v581
      %718 = vmatprep.subr.bf16.mxu0 0
      %719 = vmatpush1.bf16.msra.mxu0 %v582
      %720 = vmatprep.subr.bf16.mxu0 0
      %721 = vmatpush1.bf16.msra.mxu0 %v594
      %722 = vmatprep.subr.bf16.mxu0 0
      %723 = vmatpush1.bf16.msra.mxu0 %v595
      %724 = vmatprep.subr.bf16.mxu0 0
      %725 = vmatpush1.bf16.msra.mxu0 %v607
      %726 = vmatprep.subr.bf16.mxu0 0
      %727 = vmatpush1.bf16.msra.mxu0 %v608
      %728 = vmatprep.subr.bf16.mxu0 0
      %729 = vmatpush1.bf16.msra.mxu0 %v620
      %730 = vmatprep.subr.bf16.mxu0 0
      %731 = vmatpush1.bf16.msra.mxu0 %v621
      %732 = vmatprep.subr.bf16.mxu0 0
      %733 = vmatpush1.bf16.msra.mxu0 %v633
      %734 = vmatprep.subr.bf16.mxu0 0
      %735 = vmatpush1.bf16.msra.mxu0 %v634
      %736 = vmatprep.subr.bf16.mxu0 0
      %737 = vmatpush1.bf16.msra.mxu0 %v646
      %738 = vmatprep.subr.bf16.mxu0 0
      %739 = vmatpush1.bf16.msra.mxu0 %v647
      %740 = vmatprep.mubr.bf16.mxu0 %v692
      %741 = vmatmul.mubr.bf16.gmra.mrb[0].mxu0 %v691
      %v742 = vpop.f32.mrb[0].mxu0
      %v743 = vadd.f32 0.0, %v742
      %v744 = vpop.f32.mrb[0].mxu0
      %v745 = vpop.f32.mrb[0].mxu0
      %v746 = vadd.f32 0.0, %v745
      %v747 = vpop.f32.mrb[0].mxu0
      %748 = vmatprep.mubr.bf16.mxu0 %v695
      %749 = vmatmul.mubr.bf16.gmra.mrb[0].mxu0 %v694
      %v750 = vpop.f32.mrb[0].mxu0
      %v751 = vadd.f32 0.0, %v750
      %v752 = vpop.f32.mrb[0].mxu0
      %v753 = vpop.f32.mrb[0].mxu0
      %v754 = vadd.f32 0.0, %v753
      %v755 = vpop.f32.mrb[0].mxu0
      %756 = vdwg.mxu0
      %757 = vmatprep.subr.bf16.mxu0 0
      %758 = vmatpush1.bf16.msra.mxu0 %v659
      %759 = vmatprep.subr.bf16.mxu0 0
      %760 = vmatpush1.bf16.msra.mxu0 %v660
      %761 = vmatprep.subr.bf16.mxu0 0
      %762 = vmatpush1.bf16.msra.mxu0 0
      %763 = vmatprep.subr.bf16.mxu0 0
      %764 = vmatpush1.bf16.msra.mxu0 0
      %765 = vmatprep.subr.bf16.mxu0 0
      %766 = vmatpush1.bf16.msra.mxu0 0
      %767 = vmatprep.subr.bf16.mxu0 0
      %768 = vmatpush1.bf16.msra.mxu0 0
      %769 = vmatprep.subr.bf16.mxu0 0
      %770 = vmatpush1.bf16.msra.mxu0 0
      %771 = vmatprep.subr.bf16.mxu0 0
      %772 = vmatpush1.bf16.msra.mxu0 0
      %773 = vmatprep.subr.bf16.mxu0 0
      %774 = vmatpush1.bf16.msra.mxu0 0
      %775 = vmatprep.subr.bf16.mxu0 0
      %776 = vmatpush1.bf16.msra.mxu0 0
      %777 = vmatprep.subr.bf16.mxu0 0
      %778 = vmatpush1.bf16.msra.mxu0 0
      %779 = vmatprep.subr.bf16.mxu0 0
      %780 = vmatpush1.bf16.msra.mxu0 0
      %781 = vmatprep.subr.bf16.mxu0 0
      %782 = vmatpush1.bf16.msra.mxu0 0
      %783 = vmatprep.subr.bf16.mxu0 0
      %784 = vmatpush1.bf16.msra.mxu0 0
      %785 = vmatprep.subr.bf16.mxu0 0
      %786 = vmatpush1.bf16.msra.mxu0 0
      %787 = vmatprep.subr.bf16.mxu0 0
      %788 = vmatpush1.bf16.msra.mxu0 0
      %789 = vmatprep.mubr.bf16.mxu0 0
      %790 = vmatmul.mubr.bf16.gmra.mrb[0].mxu0 %v703
      %v791 = vpop.f32.mrb[0].mxu0
      %v792 = vadd.f32 %v743, %v791
      %v793 = vpop.f32.mrb[0].mxu0
      %v794 = vpop.f32.mrb[0].mxu0
      %v795 = vadd.f32 %v746, %v794
      %v796 = vpop.f32.mrb[0].mxu0
      %797 = vmatprep.mubr.bf16.mxu0 0
      %798 = vmatmul.mubr.bf16.gmra.mrb[0].mxu0 %v706
      %v799 = vpop.f32.mrb[0].mxu0
      %v800 = vadd.f32 %v751, %v799
      %v801 = vpop.f32.mrb[0].mxu0
      %v802 = vpop.f32.mrb[0].mxu0
      %v803 = vadd.f32 %v754, %v802
      %v804 = vpop.f32.mrb[0].mxu0
      %805 = vdwg.mxu0
      %v806 = vld [vmem:[%s5] sm:$0xf]
      %v807 = vld [vmem:[%s5 + $0x4] sm:$0xf]
      %v808 = vld [vmem:[%s5 + $0x8] sm:$0xf]
      %v809 = vld [vmem:[%s5 + $0xc] sm:$0xf]
      %v810 = vmax.f32 %v792, 0.0
      %v811 = vmax.f32 %v795, 0.0
      %v812 = vmax.f32 %v800, 0.0
      %v813 = vmax.f32 %v803, 0.0
      %v814 = vpack.c.bf16 %v811, %v810
      %v815 = vpack.c.bf16 %v813, %v812
      %v820 = vunpack.c.l.b16 %v806
      %v821 = vunpack.c.l.b16 %v807
      %v822 = vunpack.c.l.b16 %v808
      %v823 = vunpack.c.l.b16 %v809
      %v824 = vpack.c.b16 %v821, %v820
      %v825 = vpack.c.b16 %v823, %v822
      %v827 = vsel %vm701, %v824, 0
      %v830 = vsel %vm701, %v825, 0
      %832 = vmatprep.subr.bf16.mxu0 0
      %833 = vmatpush1.bf16.msra.mxu0 %v814
      %834 = vmatprep.subr.bf16.mxu0 0
      %835 = vmatpush1.bf16.msra.mxu0 %v815
      %836 = vmatprep.subr.bf16.mxu0 0
      %837 = vmatpush1.bf16.msra.mxu0 0
      %838 = vmatprep.subr.bf16.mxu0 0
      %839 = vmatpush1.bf16.msra.mxu0 0
      %840 = vmatprep.subr.bf16.mxu0 0
      %841 = vmatpush1.bf16.msra.mxu0 0
      %842 = vmatprep.subr.bf16.mxu0 0
      %843 = vmatpush1.bf16.msra.mxu0 0
      %844 = vmatprep.subr.bf16.mxu0 0
      %845 = vmatpush1.bf16.msra.mxu0 0
      %846 = vmatprep.subr.bf16.mxu0 0
      %847 = vmatpush1.bf16.msra.mxu0 0
      %848 = vmatprep.subr.bf16.mxu0 0
      %849 = vmatpush1.bf16.msra.mxu0 0
      %850 = vmatprep.subr.bf16.mxu0 0
      %851 = vmatpush1.bf16.msra.mxu0 0
      %852 = vmatprep.subr.bf16.mxu0 0
      %853 = vmatpush1.bf16.msra.mxu0 0
      %854 = vmatprep.subr.bf16.mxu0 0
      %855 = vmatpush1.bf16.msra.mxu0 0
      %856 = vmatprep.subr.bf16.mxu0 0
      %857 = vmatpush1.bf16.msra.mxu0 0
      %858 = vmatprep.subr.bf16.mxu0 0
      %859 = vmatpush1.bf16.msra.mxu0 0
      %860 = vmatprep.subr.bf16.mxu0 0
      %861 = vmatpush1.bf16.msra.mxu0 0
      %862 = vmatprep.subr.bf16.mxu0 0
      %863 = vmatpush1.bf16.msra.mxu0 0
      %864 = vmatprep.mubr.bf16.mxu0 0
      %865 = vmatmul.mubr.bf16.gmra.mrb[0].mxu0 %v827
      %v866 = vpop.f32.mrb[0].mxu0
      %v867 = vadd.f32 0.0, %v866
      %v868 = vpop.f32.mrb[0].mxu0
      %v869 = vpop.f32.mrb[0].mxu0
      %v870 = vadd.f32 0.0, %v869
      %v871 = vpop.f32.mrb[0].mxu0
      %872 = vmatprep.mubr.bf16.mxu0 0
      %873 = vmatmul.mubr.bf16.gmra.mrb[0].mxu0 %v830
      %v874 = vpop.f32.mrb[0].mxu0
      %v875 = vadd.f32 0.0, %v874
      %v876 = vpop.f32.mrb[0].mxu0
      %v877 = vpop.f32.mrb[0].mxu0
      %v878 = vadd.f32 0.0, %v877
      %v879 = vpop.f32.mrb[0].mxu0
      %880 = vdwg.mxu0
      %v881 = vadd.f32 %v507, %v867
      %v882 = vadd.f32 %v510, %v870
      %v883 = vadd.f32 %v515, %v875
      %v884 = vadd.f32 %v518, %v878
      %v885 = vmax.f32 %v881, 0.0
      %v886 = vmax.f32 %v882, 0.0
      %v887 = vmax.f32 %v883, 0.0
      %v888 = vmax.f32 %v884, 0.0
      %v889 = vmul.f32 %v885, %v529
      %v890 = vmul.f32 %v886, %v529
      %v891 = vmul.f32 %v887, %v529
      %v892 = vmul.f32 %v888, %v529
      %v893 = vpack.c.bf16 %v890, %v889
      %v894 = vpack.c.bf16 %v892, %v891
      %897 = vrot.lane.b32.xlu0 %v893, 11
      %v898 = vpop.permute.xlu0 %897
      %899 = vrot.lane.b32.xlu0 %v894, 11
      %v900 = vpop.permute.xlu0 %899
      %903 = vst.msk [vmem:[#allocation2] sm:$0xff] %vm545, %v898
      %904 = vst.msk [vmem:[#allocation2 + $0x8] sm:$0xff] %vm547, %v898
      %905 = vst.msk [vmem:[#allocation2 + $0x10] sm:$0xff] %vm545, %v900
      %906 = vst.msk [vmem:[#allocation2 + $0x18] sm:$0xff] %vm547, %v900
      %v907 = vld [vmem:[#allocation2] sm:$0xff]
      %v908 = vld [vmem:[#allocation2 + $0x8] sm:$0xff]
      %v909 = vld [vmem:[#allocation2 + $0x10] sm:$0xff]
      %v910 = vld [vmem:[#allocation2 + $0x18] sm:$0xff]
      %915 = vrot.lane.b32.xlu0 %v907, 127
      %v916 = vpop.permute.xlu0 %915
      %917 = vrot.lane.b32.xlu0 %v908, 127
      %v918 = vpop.permute.xlu0 %917
      %919 = vrot.lane.b32.xlu0 %v909, 127
      %v920 = vpop.permute.xlu0 %919
      %921 = vrot.lane.b32.xlu0 %v910, 127
      %v922 = vpop.permute.xlu0 %921
      %v923 = vsel %vm567, %v916, %v918
      %v924 = vsel %vm567, %v920, %v922
      %927 = vrot.lane.b32.xlu0 %v907, 126
      %v928 = vpop.permute.xlu0 %927
      %929 = vrot.lane.b32.xlu0 %v908, 126
      %v930 = vpop.permute.xlu0 %929
      %931 = vrot.lane.b32.xlu0 %v909, 126
      %v932 = vpop.permute.xlu0 %931
      %933 = vrot.lane.b32.xlu0 %v910, 126
      %v934 = vpop.permute.xlu0 %933
      %v935 = vsel %vm580, %v928, %v930
      %v936 = vsel %vm580, %v932, %v934
      %939 = vrot.lane.b32.xlu0 %v907, 118
      %v940 = vpop.permute.xlu0 %939
      %941 = vrot.lane.b32.xlu0 %v908, 118
      %v942 = vpop.permute.xlu0 %941
      %943 = vrot.lane.b32.xlu0 %v909, 118
      %v944 = vpop.permute.xlu0 %943
      %945 = vrot.lane.b32.xlu0 %v910, 118
      %v946 = vpop.permute.xlu0 %945
      %v947 = vsel %vm593, %v940, %v942
      %v948 = vsel %vm593, %v944, %v946
      %951 = vrot.lane.b32.xlu0 %v907, 117
      %v952 = vpop.permute.xlu0 %951
      %953 = vrot.lane.b32.xlu0 %v908, 117
      %v954 = vpop.permute.xlu0 %953
      %955 = vrot.lane.b32.xlu0 %v909, 117
      %v956 = vpop.permute.xlu0 %955
      %957 = vrot.lane.b32.xlu0 %v910, 117
      %v958 = vpop.permute.xlu0 %957
      %v959 = vsel %vm606, %v952, %v954
      %v960 = vsel %vm606, %v956, %v958
      %963 = vrot.lane.b32.xlu0 %v907, 116
      %v964 = vpop.permute.xlu0 %963
      %965 = vrot.lane.b32.xlu0 %v908, 116
      %v966 = vpop.permute.xlu0 %965
      %967 = vrot.lane.b32.xlu0 %v909, 116
      %v968 = vpop.permute.xlu0 %967
      %969 = vrot.lane.b32.xlu0 %v910, 116
      %v970 = vpop.permute.xlu0 %969
      %v971 = vsel %vm619, %v964, %v966
      %v972 = vsel %vm619, %v968, %v970
      %975 = vrot.lane.b32.xlu0 %v907, 108
      %v976 = vpop.permute.xlu0 %975
      %977 = vrot.lane.b32.xlu0 %v908, 108
      %v978 = vpop.permute.xlu0 %977
      %979 = vrot.lane.b32.xlu0 %v909, 108
      %v980 = vpop.permute.xlu0 %979
      %981 = vrot.lane.b32.xlu0 %v910, 108
      %v982 = vpop.permute.xlu0 %981
      %v983 = vsel %vm632, %v976, %v978
      %v984 = vsel %vm632, %v980, %v982
      %987 = vrot.lane.b32.xlu0 %v907, 107
      %v988 = vpop.permute.xlu0 %987
      %989 = vrot.lane.b32.xlu0 %v908, 107
      %v990 = vpop.permute.xlu0 %989
      %991 = vrot.lane.b32.xlu0 %v909, 107
      %v992 = vpop.permute.xlu0 %991
      %993 = vrot.lane.b32.xlu0 %v910, 107
      %v994 = vpop.permute.xlu0 %993
      %v995 = vsel %vm645, %v988, %v990
      %v996 = vsel %vm645, %v992, %v994
      %999 = vrot.lane.b32.xlu0 %v907, 106
      %v1000 = vpop.permute.xlu0 %999
      %1001 = vrot.lane.b32.xlu0 %v908, 106
      %v1002 = vpop.permute.xlu0 %1001
      %1003 = vrot.lane.b32.xlu0 %v909, 106
      %v1004 = vpop.permute.xlu0 %1003
      %1005 = vrot.lane.b32.xlu0 %v910, 106
      %v1006 = vpop.permute.xlu0 %1005
      %v1007 = vsel %vm658, %v1000, %v1002
      %v1008 = vsel %vm658, %v1004, %v1006
      %s1011 = scalar_lea.vmem %s4, 48
      %v1012 = vld [vmem:[%s1011] sm:$0xff]
      %v1013 = vld [vmem:[%s1011 + $0x8] sm:$0xf]
      %v1014 = vld [vmem:[%s1011 + $0xc] sm:$0xff]
      %v1015 = vld [vmem:[%s1011 + $0x14] sm:$0xf]
      %v1016 = vld [vmem:[%s1011 + $0x18] sm:$0xff]
      %v1017 = vld [vmem:[%s1011 + $0x20] sm:$0xf]
      %v1018 = vld [vmem:[%s1011 + $0x24] sm:$0xff]
      %v1019 = vld [vmem:[%s1011 + $0x2c] sm:$0xf]
      %v1028 = vunpack.c.l.b16 %v1012
      %v1029 = vunpack.c.h.b16 %v1012
      %v1030 = vunpack.c.l.b16 %v1013
      %v1031 = vunpack.c.l.b16 %v1014
      %v1032 = vunpack.c.h.b16 %v1014
      %v1033 = vunpack.c.l.b16 %v1015
      %v1034 = vunpack.c.l.b16 %v1016
      %v1035 = vunpack.c.h.b16 %v1016
      %v1036 = vunpack.c.l.b16 %v1017
      %v1037 = vunpack.c.l.b16 %v1018
      %v1038 = vunpack.c.h.b16 %v1018
      %v1039 = vunpack.c.l.b16 %v1019
      %v1040 = vpack.c.b16 %v1031, %v1028
      %v1041 = vpack.c.b16 %v1032, %v1029
      %v1042 = vpack.c.b16 %v1033, %v1030
      %v1043 = vpack.c.b16 %v1037, %v1034
      %v1044 = vpack.c.b16 %v1038, %v1035
      %v1045 = vpack.c.b16 %v1039, %v1036
      %v1051 = vsel %vm701, %v1042, 0
      %v1054 = vsel %vm701, %v1045, 0
      %1056 = vmatprep.subr.bf16.mxu0 0
      %1057 = vmatpush1.bf16.msra.mxu0 %v907
      %1058 = vmatprep.subr.bf16.mxu0 0
      %1059 = vmatpush1.bf16.msra.mxu0 %v909
      %1060 = vmatprep.subr.bf16.mxu0 0
      %1061 = vmatpush1.bf16.msra.mxu0 %v923
      %1062 = vmatprep.subr.bf16.mxu0 0
      %1063 = vmatpush1.bf16.msra.mxu0 %v924
      %1064 = vmatprep.subr.bf16.mxu0 0
      %1065 = vmatpush1.bf16.msra.mxu0 %v935
      %1066 = vmatprep.subr.bf16.mxu0 0
      %1067 = vmatpush1.bf16.msra.mxu0 %v936
      %1068 = vmatprep.subr.bf16.mxu0 0
      %1069 = vmatpush1.bf16.msra.mxu0 %v947
      %1070 = vmatprep.subr.bf16.mxu0 0
      %1071 = vmatpush1.bf16.msra.mxu0 %v948
      %1072 = vmatprep.subr.bf16.mxu0 0
      %1073 = vmatpush1.bf16.msra.mxu0 %v959
      %1074 = vmatprep.subr.bf16.mxu0 0
      %1075 = vmatpush1.bf16.msra.mxu0 %v960
      %1076 = vmatprep.subr.bf16.mxu0 0
      %1077 = vmatpush1.bf16.msra.mxu0 %v971
      %1078 = vmatprep.subr.bf16.mxu0 0
      %1079 = vmatpush1.bf16.msra.mxu0 %v972
      %1080 = vmatprep.subr.bf16.mxu0 0
      %1081 = vmatpush1.bf16.msra.mxu0 %v983
      %1082 = vmatprep.subr.bf16.mxu0 0
      %1083 = vmatpush1.bf16.msra.mxu0 %v984
      %1084 = vmatprep.subr.bf16.mxu0 0
      %1085 = vmatpush1.bf16.msra.mxu0 %v995
      %1086 = vmatprep.subr.bf16.mxu0 0
      %1087 = vmatpush1.bf16.msra.mxu0 %v996
      %1088 = vmatprep.mubr.bf16.mxu0 %v1041
      %1089 = vmatmul.mubr.bf16.gmra.mrb[0].mxu0 %v1040
      %v1090 = vpop.f32.mrb[0].mxu0
      %v1091 = vadd.f32 0.0, %v1090
      %v1092 = vpop.f32.mrb[0].mxu0
      %v1093 = vpop.f32.mrb[0].mxu0
      %v1094 = vadd.f32 0.0, %v1093
      %v1095 = vpop.f32.mrb[0].mxu0
      %1096 = vmatprep.mubr.bf16.mxu0 %v1044
      %1097 = vmatmul.mubr.bf16.gmra.mrb[0].mxu0 %v1043
      %v1098 = vpop.f32.mrb[0].mxu0
      %v1099 = vadd.f32 0.0, %v1098
      %v1100 = vpop.f32.mrb[0].mxu0
      %v1101 = vpop.f32.mrb[0].mxu0
      %v1102 = vadd.f32 0.0, %v1101
      %v1103 = vpop.f32.mrb[0].mxu0
      %1104 = vdwg.mxu0
      %1105 = vmatprep.subr.bf16.mxu0 0
      %1106 = vmatpush1.bf16.msra.mxu0 %v1007
      %1107 = vmatprep.subr.bf16.mxu0 0
      %1108 = vmatpush1.bf16.msra.mxu0 %v1008
      %1109 = vmatprep.subr.bf16.mxu0 0
      %1110 = vmatpush1.bf16.msra.mxu0 0
      %1111 = vmatprep.subr.bf16.mxu0 0
      %1112 = vmatpush1.bf16.msra.mxu0 0
      %1113 = vmatprep.subr.bf16.mxu0 0
      %1114 = vmatpush1.bf16.msra.mxu0 0
      %1115 = vmatprep.subr.bf16.mxu0 0
      %1116 = vmatpush1.bf16.msra.mxu0 0
      %1117 = vmatprep.subr.bf16.mxu0 0
      %1118 = vmatpush1.bf16.msra.mxu0 0
      %1119 = vmatprep.subr.bf16.mxu0 0
      %1120 = vmatpush1.bf16.msra.mxu0 0
      %1121 = vmatprep.subr.bf16.mxu0 0
      %1122 = vmatpush1.bf16.msra.mxu0 0
      %1123 = vmatprep.subr.bf16.mxu0 0
      %1124 = vmatpush1.bf16.msra.mxu0 0
      %1125 = vmatprep.subr.bf16.mxu0 0
      %1126 = vmatpush1.bf16.msra.mxu0 0
      %1127 = vmatprep.subr.bf16.mxu0 0
      %1128 = vmatpush1.bf16.msra.mxu0 0
      %1129 = vmatprep.subr.bf16.mxu0 0
      %1130 = vmatpush1.bf16.msra.mxu0 0
      %1131 = vmatprep.subr.bf16.mxu0 0
      %1132 = vmatpush1.bf16.msra.mxu0 0
      %1133 = vmatprep.subr.bf16.mxu0 0
      %1134 = vmatpush1.bf16.msra.mxu0 0
      %1135 = vmatprep.subr.bf16.mxu0 0
      %1136 = vmatpush1.bf16.msra.mxu0 0
      %1137 = vmatprep.mubr.bf16.mxu0 0
      %1138 = vmatmul.mubr.bf16.gmra.mrb[0].mxu0 %v1051
      %v1139 = vpop.f32.mrb[0].mxu0
      %v1140 = vadd.f32 %v1091, %v1139
      %v1141 = vpop.f32.mrb[0].mxu0
      %v1142 = vpop.f32.mrb[0].mxu0
      %v1143 = vadd.f32 %v1094, %v1142
      %v1144 = vpop.f32.mrb[0].mxu0
      %1145 = vmatprep.mubr.bf16.mxu0 0
      %1146 = vmatmul.mubr.bf16.gmra.mrb[0].mxu0 %v1054
      %v1147 = vpop.f32.mrb[0].mxu0
      %v1148 = vadd.f32 %v1099, %v1147
      %v1149 = vpop.f32.mrb[0].mxu0
      %v1150 = vpop.f32.mrb[0].mxu0
      %v1151 = vadd.f32 %v1102, %v1150
      %v1152 = vpop.f32.mrb[0].mxu0
      %1153 = vdwg.mxu0
      %s1154 = scalar_lea.vmem %s5, 16
      %v1155 = vld [vmem:[%s1154] sm:$0xf]
      %v1156 = vld [vmem:[%s1154 + $0x4] sm:$0xf]
      %v1157 = vld [vmem:[%s1154 + $0x8] sm:$0xf]
      %v1158 = vld [vmem:[%s1154 + $0xc] sm:$0xf]
      %v1159 = vmax.f32 %v1140, 0.0
      %v1160 = vmax.f32 %v1143, 0.0
      %v1161 = vmax.f32 %v1148, 0.0
      %v1162 = vmax.f32 %v1151, 0.0
      %v1163 = vpack.c.bf16 %v1160, %v1159
      %v1164 = vpack.c.bf16 %v1162, %v1161
      %v1169 = vunpack.c.l.b16 %v1155
      %v1170 = vunpack.c.l.b16 %v1156
      %v1171 = vunpack.c.l.b16 %v1157
      %v1172 = vunpack.c.l.b16 %v1158
      %v1173 = vpack.c.b16 %v1170, %v1169
      %v1174 = vpack.c.b16 %v1172, %v1171
      %v1176 = vsel %vm701, %v1173, 0
      %v1179 = vsel %vm701, %v1174, 0
      %1181 = vmatprep.subr.bf16.mxu0 0
      %1182 = vmatpush1.bf16.msra.mxu0 %v1163
      %1183 = vmatprep.subr.bf16.mxu0 0
      %1184 = vmatpush1.bf16.msra.mxu0 %v1164
      %1185 = vmatprep.subr.bf16.mxu0 0
      %1186 = vmatpush1.bf16.msra.mxu0 0
      %1187 = vmatprep.subr.bf16.mxu0 0
      %1188 = vmatpush1.bf16.msra.mxu0 0
      %1189 = vmatprep.subr.bf16.mxu0 0
      %1190 = vmatpush1.bf16.msra.mxu0 0
      %1191 = vmatprep.subr.bf16.mxu0 0
      %1192 = vmatpush1.bf16.msra.mxu0 0
      %1193 = vmatprep.subr.bf16.mxu0 0
      %1194 = vmatpush1.bf16.msra.mxu0 0
      %1195 = vmatprep.subr.bf16.mxu0 0
      %1196 = vmatpush1.bf16.msra.mxu0 0
      %1197 = vmatprep.subr.bf16.mxu0 0
      %1198 = vmatpush1.bf16.msra.mxu0 0
      %1199 = vmatprep.subr.bf16.mxu0 0
      %1200 = vmatpush1.bf16.msra.mxu0 0
      %1201 = vmatprep.subr.bf16.mxu0 0
      %1202 = vmatpush1.bf16.msra.mxu0 0
      %1203 = vmatprep.subr.bf16.mxu0 0
      %1204 = vmatpush1.bf16.msra.mxu0 0
      %1205 = vmatprep.subr.bf16.mxu0 0
      %1206 = vmatpush1.bf16.msra.mxu0 0
      %1207 = vmatprep.subr.bf16.mxu0 0
      %1208 = vmatpush1.bf16.msra.mxu0 0
      %1209 = vmatprep.subr.bf16.mxu0 0
      %1210 = vmatpush1.bf16.msra.mxu0 0
      %1211 = vmatprep.subr.bf16.mxu0 0
      %1212 = vmatpush1.bf16.msra.mxu0 0
      %1213 = vmatprep.mubr.bf16.mxu0 0
      %1214 = vmatmul.mubr.bf16.gmra.mrb[0].mxu0 %v1176
      %v1215 = vpop.f32.mrb[0].mxu0
      %v1216 = vadd.f32 0.0, %v1215
      %v1217 = vpop.f32.mrb[0].mxu0
      %v1218 = vpop.f32.mrb[0].mxu0
      %v1219 = vadd.f32 0.0, %v1218
      %v1220 = vpop.f32.mrb[0].mxu0
      %1221 = vmatprep.mubr.bf16.mxu0 0
      %1222 = vmatmul.mubr.bf16.gmra.mrb[0].mxu0 %v1179
      %v1223 = vpop.f32.mrb[0].mxu0
      %v1224 = vadd.f32 0.0, %v1223
      %v1225 = vpop.f32.mrb[0].mxu0
      %v1226 = vpop.f32.mrb[0].mxu0
      %v1227 = vadd.f32 0.0, %v1226
      %v1228 = vpop.f32.mrb[0].mxu0
      %1229 = vdwg.mxu0
      %v1230 = vadd.f32 %v881, %v1216
      %v1231 = vadd.f32 %v882, %v1219
      %v1232 = vadd.f32 %v883, %v1224
      %v1233 = vadd.f32 %v884, %v1227
      %vm1234 = vcmp.ge.f32.partialorder %v1230, 0.0
      %vm1235 = vcmp.ge.f32.partialorder %v1231, 0.0
      %vm1236 = vcmp.ge.f32.partialorder %v1232, 0.0
      %vm1237 = vcmp.ge.f32.partialorder %v1233, 0.0
      %v1238 = vmul.f32 %v1230, 0.01
      %v1239 = vmul.f32 %v1231, 0.01
      %v1240 = vmul.f32 %v1232, 0.01
      %v1241 = vmul.f32 %v1233, 0.01
      %v1242 = vsel %vm1234, %v1230, %v1238
      %v1243 = vsel %vm1235, %v1231, %v1239
      %v1244 = vsel %vm1236, %v1232, %v1240
      %v1245 = vsel %vm1237, %v1233, %v1241
      %v1246 = vmul.f32 %v1242, %v529
      %v1247 = vmul.f32 %v1243, %v529
      %v1248 = vmul.f32 %v1244, %v529
      %v1249 = vmul.f32 %v1245, %v529
      %v1250 = vpack.c.bf16 %v1247, %v1246
      %v1251 = vpack.c.bf16 %v1249, %v1248
      %1254 = vrot.lane.b32.xlu0 %v1250, 11
      %v1255 = vpop.permute.xlu0 %1254
      %1256 = vrot.lane.b32.xlu0 %v1251, 11
      %v1257 = vpop.permute.xlu0 %1256
      %1260 = vst.msk [vmem:[#allocation2] sm:$0xff] %vm545, %v1255
      %1261 = vst.msk [vmem:[#allocation2 + $0x8] sm:$0xff] %vm547, %v1255
      %1262 = vst.msk [vmem:[#allocation2 + $0x10] sm:$0xff] %vm545, %v1257
      %1263 = vst.msk [vmem:[#allocation2 + $0x18] sm:$0xff] %vm547, %v1257
      %v1264 = vld [vmem:[#allocation2] sm:$0xff]
      %v1265 = vld [vmem:[#allocation2 + $0x8] sm:$0xff]
      %v1266 = vld [vmem:[#allocation2 + $0x10] sm:$0xff]
      %v1267 = vld [vmem:[#allocation2 + $0x18] sm:$0xff]
      %1272 = vrot.lane.b32.xlu0 %v1264, 127
      %v1273 = vpop.permute.xlu0 %1272
      %1274 = vrot.lane.b32.xlu0 %v1265, 127
      %v1275 = vpop.permute.xlu0 %1274
      %1276 = vrot.lane.b32.xlu0 %v1266, 127
      %v1277 = vpop.permute.xlu0 %1276
      %1278 = vrot.lane.b32.xlu0 %v1267, 127
      %v1279 = vpop.permute.xlu0 %1278
      %v1280 = vsel %vm567, %v1273, %v1275
      %v1281 = vsel %vm567, %v1277, %v1279
      %1284 = vrot.lane.b32.xlu0 %v1264, 126
      %v1285 = vpop.permute.xlu0 %1284
      %1286 = vrot.lane.b32.xlu0 %v1265, 126
      %v1287 = vpop.permute.xlu0 %1286
      %1288 = vrot.lane.b32.xlu0 %v1266, 126
      %v1289 = vpop.permute.xlu0 %1288
      %1290 = vrot.lane.b32.xlu0 %v1267, 126
      %v1291 = vpop.permute.xlu0 %1290
      %v1292 = vsel %vm580, %v1285, %v1287
      %v1293 = vsel %vm580, %v1289, %v1291
      %1296 = vrot.lane.b32.xlu0 %v1264, 118
      %v1297 = vpop.permute.xlu0 %1296
      %1298 = vrot.lane.b32.xlu0 %v1265, 118
      %v1299 = vpop.permute.xlu0 %1298
      %1300 = vrot.lane.b32.xlu0 %v1266, 118
      %v1301 = vpop.permute.xlu0 %1300
      %1302 = vrot.lane.b32.xlu0 %v1267, 118
      %v1303 = vpop.permute.xlu0 %1302
      %v1304 = vsel %vm593, %v1297, %v1299
      %v1305 = vsel %vm593, %v1301, %v1303
      %1308 = vrot.lane.b32.xlu0 %v1264, 117
      %v1309 = vpop.permute.xlu0 %1308
      %1310 = vrot.lane.b32.xlu0 %v1265, 117
      %v1311 = vpop.permute.xlu0 %1310
      %1312 = vrot.lane.b32.xlu0 %v1266, 117
      %v1313 = vpop.permute.xlu0 %1312
      %1314 = vrot.lane.b32.xlu0 %v1267, 117
      %v1315 = vpop.permute.xlu0 %1314
      %v1316 = vsel %vm606, %v1309, %v1311
      %v1317 = vsel %vm606, %v1313, %v1315
      %1320 = vrot.lane.b32.xlu0 %v1264, 116
      %v1321 = vpop.permute.xlu0 %1320
      %1322 = vrot.lane.b32.xlu0 %v1265, 116
      %v1323 = vpop.permute.xlu0 %1322
      %1324 = vrot.lane.b32.xlu0 %v1266, 116
      %v1325 = vpop.permute.xlu0 %1324
      %1326 = vrot.lane.b32.xlu0 %v1267, 116
      %v1327 = vpop.permute.xlu0 %1326
      %v1328 = vsel %vm619, %v1321, %v1323
      %v1329 = vsel %vm619, %v1325, %v1327
      %1332 = vrot.lane.b32.xlu0 %v1264, 108
      %v1333 = vpop.permute.xlu0 %1332
      %1334 = vrot.lane.b32.xlu0 %v1265, 108
      %v1335 = vpop.permute.xlu0 %1334
      %1336 = vrot.lane.b32.xlu0 %v1266, 108
      %v1337 = vpop.permute.xlu0 %1336
      %1338 = vrot.lane.b32.xlu0 %v1267, 108
      %v1339 = vpop.permute.xlu0 %1338
      %v1340 = vsel %vm632, %v1333, %v1335
      %v1341 = vsel %vm632, %v1337, %v1339
      %1344 = vrot.lane.b32.xlu0 %v1264, 107
      %v1345 = vpop.permute.xlu0 %1344
      %1346 = vrot.lane.b32.xlu0 %v1265, 107
      %v1347 = vpop.permute.xlu0 %1346
      %1348 = vrot.lane.b32.xlu0 %v1266, 107
      %v1349 = vpop.permute.xlu0 %1348
      %1350 = vrot.lane.b32.xlu0 %v1267, 107
      %v1351 = vpop.permute.xlu0 %1350
      %v1352 = vsel %vm645, %v1345, %v1347
      %v1353 = vsel %vm645, %v1349, %v1351
      %1356 = vrot.lane.b32.xlu0 %v1264, 106
      %v1357 = vpop.permute.xlu0 %1356
      %1358 = vrot.lane.b32.xlu0 %v1265, 106
      %v1359 = vpop.permute.xlu0 %1358
      %1360 = vrot.lane.b32.xlu0 %v1266, 106
      %v1361 = vpop.permute.xlu0 %1360
      %1362 = vrot.lane.b32.xlu0 %v1267, 106
      %v1363 = vpop.permute.xlu0 %1362
      %v1364 = vsel %vm658, %v1357, %v1359
      %v1365 = vsel %vm658, %v1361, %v1363
      %v1368 = vld [vmem:[%s6] sm:$0xff]
      %v1369 = vld [vmem:[%s6 + $0x8] sm:$0xf]
      %v1370 = vld [vmem:[%s6 + $0xc] sm:$0xff]
      %v1371 = vld [vmem:[%s6 + $0x14] sm:$0xf]
      %v1372 = vld [vmem:[%s6 + $0x18] sm:$0xff]
      %v1373 = vld [vmem:[%s6 + $0x20] sm:$0xf]
      %v1374 = vld [vmem:[%s6 + $0x24] sm:$0xff]
      %v1375 = vld [vmem:[%s6 + $0x2c] sm:$0xf]
      %v1376 = vld [vmem:[%s7] sm:$0xff]
      %v1377 = vld [vmem:[%s7 + $0x8] sm:$0xff]
      %v1378 = vld [vmem:[%s7 + $0x10] sm:$0xff]
      %v1379 = vld [vmem:[%s7 + $0x18] sm:$0xff]
      %1381 = vset.pattern.permute.xlu0 0
      %1382 = vperm.xlu0 %1381, %v1376
      %v1383 = vpop.permute.xlu0 %1382
      %1386 = vset.pattern.permute.xlu0 0
      %1387 = vperm.xlu0 %1386, %v1377
      %v1388 = vpop.permute.xlu0 %1387
      %1391 = vset.pattern.permute.xlu0 0
      %1392 = vperm.xlu0 %1391, %v1378
      %v1393 = vpop.permute.xlu0 %1392
      %1396 = vset.pattern.permute.xlu0 0
      %1397 = vperm.xlu0 %1396, %v1379
      %v1398 = vpop.permute.xlu0 %1397
      %v1408 = vunpack.c.l.b16 %v1368
      %v1409 = vunpack.c.h.b16 %v1368
      %v1410 = vunpack.c.l.b16 %v1369
      %v1411 = vunpack.c.l.b16 %v1370
      %v1412 = vunpack.c.h.b16 %v1370
      %v1413 = vunpack.c.l.b16 %v1371
      %v1414 = vunpack.c.l.b16 %v1372
      %v1415 = vunpack.c.h.b16 %v1372
      %v1416 = vunpack.c.l.b16 %v1373
      %v1417 = vunpack.c.l.b16 %v1374
      %v1418 = vunpack.c.h.b16 %v1374
      %v1419 = vunpack.c.l.b16 %v1375
      %v1420 = vpack.c.b16 %v1411, %v1408
      %v1421 = vpack.c.b16 %v1412, %v1409
      %v1422 = vpack.c.b16 %v1413, %v1410
      %v1423 = vpack.c.b16 %v1417, %v1414
      %v1424 = vpack.c.b16 %v1418, %v1415
      %v1425 = vpack.c.b16 %v1419, %v1416
      %v1431 = vsel %vm701, %v1422, 0
      %v1434 = vsel %vm701, %v1425, 0
      %1436 = vmatprep.subr.bf16.mxu0 0
      %1437 = vmatpush1.bf16.msra.mxu0 %v1264
      %1438 = vmatprep.subr.bf16.mxu0 0
      %1439 = vmatpush1.bf16.msra.mxu0 %v1266
      %1440 = vmatprep.subr.bf16.mxu0 0
      %1441 = vmatpush1.bf16.msra.mxu0 %v1280
      %1442 = vmatprep.subr.bf16.mxu0 0
      %1443 = vmatpush1.bf16.msra.mxu0 %v1281
      %1444 = vmatprep.subr.bf16.mxu0 0
      %1445 = vmatpush1.bf16.msra.mxu0 %v1292
      %1446 = vmatprep.subr.bf16.mxu0 0
      %1447 = vmatpush1.bf16.msra.mxu0 %v1293
      %1448 = vmatprep.subr.bf16.mxu0 0
      %1449 = vmatpush1.bf16.msra.mxu0 %v1304
      %1450 = vmatprep.subr.bf16.mxu0 0
      %1451 = vmatpush1.bf16.msra.mxu0 %v1305
      %1452 = vmatprep.subr.bf16.mxu0 0
      %1453 = vmatpush1.bf16.msra.mxu0 %v1316
      %1454 = vmatprep.subr.bf16.mxu0 0
      %1455 = vmatpush1.bf16.msra.mxu0 %v1317
      %1456 = vmatprep.subr.bf16.mxu0 0
      %1457 = vmatpush1.bf16.msra.mxu0 %v1328
      %1458 = vmatprep.subr.bf16.mxu0 0
      %1459 = vmatpush1.bf16.msra.mxu0 %v1329
      %1460 = vmatprep.subr.bf16.mxu0 0
      %1461 = vmatpush1.bf16.msra.mxu0 %v1340
      %1462 = vmatprep.subr.bf16.mxu0 0
      %1463 = vmatpush1.bf16.msra.mxu0 %v1341
      %1464 = vmatprep.subr.bf16.mxu0 0
      %1465 = vmatpush1.bf16.msra.mxu0 %v1352
      %1466 = vmatprep.subr.bf16.mxu0 0
      %1467 = vmatpush1.bf16.msra.mxu0 %v1353
      %1468 = vmatprep.mubr.bf16.mxu0 %v1421
      %1469 = vmatmul.mubr.bf16.gmra.mrb[0].mxu0 %v1420
      %v1470 = vpop.f32.mrb[0].mxu0
      %v1471 = vadd.f32 %v1383, %v1470
      %v1472 = vpop.f32.mrb[0].mxu0
      %v1473 = vpop.f32.mrb[0].mxu0
      %v1474 = vadd.f32 %v1388, %v1473
      %v1475 = vpop.f32.mrb[0].mxu0
      %1476 = vmatprep.mubr.bf16.mxu0 %v1424
      %1477 = vmatmul.mubr.bf16.gmra.mrb[0].mxu0 %v1423
      %v1478 = vpop.f32.mrb[0].mxu0
      %v1479 = vadd.f32 %v1393, %v1478
      %v1480 = vpop.f32.mrb[0].mxu0
      %v1481 = vpop.f32.mrb[0].mxu0
      %v1482 = vadd.f32 %v1398, %v1481
      %v1483 = vpop.f32.mrb[0].mxu0
      %1484 = vdwg.mxu0
      %1485 = vmatprep.subr.bf16.mxu0 0
      %1486 = vmatpush1.bf16.msra.mxu0 %v1364
      %1487 = vmatprep.subr.bf16.mxu0 0
      %1488 = vmatpush1.bf16.msra.mxu0 %v1365
      %1489 = vmatprep.subr.bf16.mxu0 0
      %1490 = vmatpush1.bf16.msra.mxu0 0
      %1491 = vmatprep.subr.bf16.mxu0 0
      %1492 = vmatpush1.bf16.msra.mxu0 0
      %1493 = vmatprep.subr.bf16.mxu0 0
      %1494 = vmatpush1.bf16.msra.mxu0 0
      %1495 = vmatprep.subr.bf16.mxu0 0
      %1496 = vmatpush1.bf16.msra.mxu0 0
      %1497 = vmatprep.subr.bf16.mxu0 0
      %1498 = vmatpush1.bf16.msra.mxu0 0
      %1499 = vmatprep.subr.bf16.mxu0 0
      %1500 = vmatpush1.bf16.msra.mxu0 0
      %1501 = vmatprep.subr.bf16.mxu0 0
      %1502 = vmatpush1.bf16.msra.mxu0 0
      %1503 = vmatprep.subr.bf16.mxu0 0
      %1504 = vmatpush1.bf16.msra.mxu0 0
      %1505 = vmatprep.subr.bf16.mxu0 0
      %1506 = vmatpush1.bf16.msra.mxu0 0
      %1507 = vmatprep.subr.bf16.mxu0 0
      %1508 = vmatpush1.bf16.msra.mxu0 0
      %1509 = vmatprep.subr.bf16.mxu0 0
      %1510 = vmatpush1.bf16.msra.mxu0 0
      %1511 = vmatprep.subr.bf16.mxu0 0
      %1512 = vmatpush1.bf16.msra.mxu0 0
      %1513 = vmatprep.subr.bf16.mxu0 0
      %1514 = vmatpush1.bf16.msra.mxu0 0
      %1515 = vmatprep.subr.bf16.mxu0 0
      %1516 = vmatpush1.bf16.msra.mxu0 0
      %1517 = vmatprep.mubr.bf16.mxu0 0
      %1518 = vmatmul.mubr.bf16.gmra.mrb[0].mxu0 %v1431
      %v1519 = vpop.f32.mrb[0].mxu0
      %v1520 = vadd.f32 %v1471, %v1519
      %v1521 = vpop.f32.mrb[0].mxu0
      %v1522 = vpop.f32.mrb[0].mxu0
      %v1523 = vadd.f32 %v1474, %v1522
      %v1524 = vpop.f32.mrb[0].mxu0
      %1525 = vmatprep.mubr.bf16.mxu0 0
      %1526 = vmatmul.mubr.bf16.gmra.mrb[0].mxu0 %v1434
      %v1527 = vpop.f32.mrb[0].mxu0
      %v1528 = vadd.f32 %v1479, %v1527
      %v1529 = vpop.f32.mrb[0].mxu0
      %v1530 = vpop.f32.mrb[0].mxu0
      %v1531 = vadd.f32 %v1482, %v1530
      %v1532 = vpop.f32.mrb[0].mxu0
      %1533 = vdwg.mxu0
      %vm1534 = vcmp.ge.f32.partialorder %v1520, 0.0
      %vm1535 = vcmp.ge.f32.partialorder %v1523, 0.0
      %vm1536 = vcmp.ge.f32.partialorder %v1528, 0.0
      %vm1537 = vcmp.ge.f32.partialorder %v1531, 0.0
      %v1538 = vmul.f32 %v1520, 0.01
      %v1539 = vmul.f32 %v1523, 0.01
      %v1540 = vmul.f32 %v1528, 0.01
      %v1541 = vmul.f32 %v1531, 0.01
      %v1542 = vsel %vm1534, %v1520, %v1538
      %v1543 = vsel %vm1535, %v1523, %v1539
      %v1544 = vsel %vm1536, %v1528, %v1540
      %v1545 = vsel %vm1537, %v1531, %v1541
      %v1546 = vmul.f32 %v1542, %v529
      %v1547 = vmul.f32 %v1543, %v529
      %v1548 = vmul.f32 %v1544, %v529
      %v1549 = vmul.f32 %v1545, %v529
      %v1550 = vpack.c.bf16 %v1547, %v1546
      %v1551 = vpack.c.bf16 %v1549, %v1548
      %1554 = vrot.lane.b32.xlu0 %v1550, 11
      %v1555 = vpop.permute.xlu0 %1554
      %1556 = vrot.lane.b32.xlu0 %v1551, 11
      %v1557 = vpop.permute.xlu0 %1556
      %1560 = vst.msk [vmem:[#allocation2] sm:$0xff] %vm545, %v1555
      %1561 = vst.msk [vmem:[#allocation2 + $0x8] sm:$0xff] %vm547, %v1555
      %1562 = vst.msk [vmem:[#allocation2 + $0x10] sm:$0xff] %vm545, %v1557
      %1563 = vst.msk [vmem:[#allocation2 + $0x18] sm:$0xff] %vm547, %v1557
      %v1564 = vld [vmem:[#allocation2] sm:$0xff]
      %v1565 = vld [vmem:[#allocation2 + $0x8] sm:$0xff]
      %v1566 = vld [vmem:[#allocation2 + $0x10] sm:$0xff]
      %v1567 = vld [vmem:[#allocation2 + $0x18] sm:$0xff]
      %1572 = vrot.lane.b32.xlu0 %v1564, 127
      %v1573 = vpop.permute.xlu0 %1572
      %1574 = vrot.lane.b32.xlu0 %v1565, 127
      %v1575 = vpop.permute.xlu0 %1574
      %1576 = vrot.lane.b32.xlu0 %v1566, 127
      %v1577 = vpop.permute.xlu0 %1576
      %1578 = vrot.lane.b32.xlu0 %v1567, 127
      %v1579 = vpop.permute.xlu0 %1578
      %v1580 = vsel %vm567, %v1573, %v1575
      %v1581 = vsel %vm567, %v1577, %v1579
      %1584 = vrot.lane.b32.xlu0 %v1564, 126
      %v1585 = vpop.permute.xlu0 %1584
      %1586 = vrot.lane.b32.xlu0 %v1565, 126
      %v1587 = vpop.permute.xlu0 %1586
      %1588 = vrot.lane.b32.xlu0 %v1566, 126
      %v1589 = vpop.permute.xlu0 %1588
      %1590 = vrot.lane.b32.xlu0 %v1567, 126
      %v1591 = vpop.permute.xlu0 %1590
      %v1592 = vsel %vm580, %v1585, %v1587
      %v1593 = vsel %vm580, %v1589, %v1591
      %1596 = vrot.lane.b32.xlu0 %v1564, 118
      %v1597 = vpop.permute.xlu0 %1596
      %1598 = vrot.lane.b32.xlu0 %v1565, 118
      %v1599 = vpop.permute.xlu0 %1598
      %1600 = vrot.lane.b32.xlu0 %v1566, 118
      %v1601 = vpop.permute.xlu0 %1600
      %1602 = vrot.lane.b32.xlu0 %v1567, 118
      %v1603 = vpop.permute.xlu0 %1602
      %v1604 = vsel %vm593, %v1597, %v1599
      %v1605 = vsel %vm593, %v1601, %v1603
      %1608 = vrot.lane.b32.xlu0 %v1564, 117
      %v1609 = vpop.permute.xlu0 %1608
      %1610 = vrot.lane.b32.xlu0 %v1565, 117
      %v1611 = vpop.permute.xlu0 %1610
      %1612 = vrot.lane.b32.xlu0 %v1566, 117
      %v1613 = vpop.permute.xlu0 %1612
      %1614 = vrot.lane.b32.xlu0 %v1567, 117
      %v1615 = vpop.permute.xlu0 %1614
      %v1616 = vsel %vm606, %v1609, %v1611
      %v1617 = vsel %vm606, %v1613, %v1615
      %1620 = vrot.lane.b32.xlu0 %v1564, 116
      %v1621 = vpop.permute.xlu0 %1620
      %1622 = vrot.lane.b32.xlu0 %v1565, 116
      %v1623 = vpop.permute.xlu0 %1622
      %1624 = vrot.lane.b32.xlu0 %v1566, 116
      %v1625 = vpop.permute.xlu0 %1624
      %1626 = vrot.lane.b32.xlu0 %v1567, 116
      %v1627 = vpop.permute.xlu0 %1626
      %v1628 = vsel %vm619, %v1621, %v1623
      %v1629 = vsel %vm619, %v1625, %v1627
      %1632 = vrot.lane.b32.xlu0 %v1564, 108
      %v1633 = vpop.permute.xlu0 %1632
      %1634 = vrot.lane.b32.xlu0 %v1565, 108
      %v1635 = vpop.permute.xlu0 %1634
      %1636 = vrot.lane.b32.xlu0 %v1566, 108
      %v1637 = vpop.permute.xlu0 %1636
      %1638 = vrot.lane.b32.xlu0 %v1567, 108
      %v1639 = vpop.permute.xlu0 %1638
      %v1640 = vsel %vm632, %v1633, %v1635
      %v1641 = vsel %vm632, %v1637, %v1639
      %1644 = vrot.lane.b32.xlu0 %v1564, 107
      %v1645 = vpop.permute.xlu0 %1644
      %1646 = vrot.lane.b32.xlu0 %v1565, 107
      %v1647 = vpop.permute.xlu0 %1646
      %1648 = vrot.lane.b32.xlu0 %v1566, 107
      %v1649 = vpop.permute.xlu0 %1648
      %1650 = vrot.lane.b32.xlu0 %v1567, 107
      %v1651 = vpop.permute.xlu0 %1650
      %v1652 = vsel %vm645, %v1645, %v1647
      %v1653 = vsel %vm645, %v1649, %v1651
      %1656 = vrot.lane.b32.xlu0 %v1564, 106
      %v1657 = vpop.permute.xlu0 %1656
      %1658 = vrot.lane.b32.xlu0 %v1565, 106
      %v1659 = vpop.permute.xlu0 %1658
      %1660 = vrot.lane.b32.xlu0 %v1566, 106
      %v1661 = vpop.permute.xlu0 %1660
      %1662 = vrot.lane.b32.xlu0 %v1567, 106
      %v1663 = vpop.permute.xlu0 %1662
      %v1664 = vsel %vm658, %v1657, %v1659
      %v1665 = vsel %vm658, %v1661, %v1663
      %v1668 = vld [vmem:[%s8] sm:$0xff]
      %v1669 = vld [vmem:[%s8 + $0x8] sm:$0xf]
      %v1670 = vld [vmem:[%s8 + $0xc] sm:$0xff]
      %v1671 = vld [vmem:[%s8 + $0x14] sm:$0xf]
      %v1672 = vld [vmem:[%s8 + $0x18] sm:$0xff]
      %v1673 = vld [vmem:[%s8 + $0x20] sm:$0xf]
      %v1674 = vld [vmem:[%s8 + $0x24] sm:$0xff]
      %v1675 = vld [vmem:[%s8 + $0x2c] sm:$0xf]
      %v1676 = vld [vmem:[%s8 + $0x30] sm:$0xff]
      %v1677 = vld [vmem:[%s8 + $0x38] sm:$0xf]
      %v1678 = vld [vmem:[%s8 + $0x3c] sm:$0xff]
      %v1679 = vld [vmem:[%s8 + $0x44] sm:$0xf]
      %v1680 = vld [vmem:[%s8 + $0x48] sm:$0xff]
      %v1681 = vld [vmem:[%s8 + $0x50] sm:$0xf]
      %v1682 = vld [vmem:[%s8 + $0x54] sm:$0xff]
      %v1683 = vld [vmem:[%s8 + $0x5c] sm:$0xf]
      %v1684 = vld [vmem:[%s9] sm:$0xff]
      %v1685 = vld [vmem:[%s9 + $0x8] sm:$0xff]
      %v1686 = vld [vmem:[%s9 + $0x10] sm:$0xff]
      %v1687 = vld [vmem:[%s9 + $0x18] sm:$0xff]
      %v1688 = vld [vmem:[%s9 + $0x20] sm:$0xff]
      %v1689 = vld [vmem:[%s9 + $0x28] sm:$0xff]
      %v1690 = vld [vmem:[%s9 + $0x30] sm:$0xff]
      %v1691 = vld [vmem:[%s9 + $0x38] sm:$0xff]
      %1693 = vset.pattern.permute.xlu0 0
      %1694 = vperm.xlu0 %1693, %v1684
      %v1695 = vpop.permute.xlu0 %1694
      %1698 = vset.pattern.permute.xlu0 0
      %1699 = vperm.xlu0 %1698, %v1685
      %v1700 = vpop.permute.xlu0 %1699
      %1703 = vset.pattern.permute.xlu0 0
      %1704 = vperm.xlu0 %1703, %v1686
      %v1705 = vpop.permute.xlu0 %1704
      %1708 = vset.pattern.permute.xlu0 0
      %1709 = vperm.xlu0 %1708, %v1687
      %v1710 = vpop.permute.xlu0 %1709
      %1713 = vset.pattern.permute.xlu0 0
      %1714 = vperm.xlu0 %1713, %v1688
      %v1715 = vpop.permute.xlu0 %1714
      %1718 = vset.pattern.permute.xlu0 0
      %1719 = vperm.xlu0 %1718, %v1689
      %v1720 = vpop.permute.xlu0 %1719
      %1723 = vset.pattern.permute.xlu0 0
      %1724 = vperm.xlu0 %1723, %v1690
      %v1725 = vpop.permute.xlu0 %1724
      %1728 = vset.pattern.permute.xlu0 0
      %1729 = vperm.xlu0 %1728, %v1691
      %v1730 = vpop.permute.xlu0 %1729
      %v1748 = vunpack.c.l.b16 %v1668
      %v1749 = vunpack.c.h.b16 %v1668
      %v1750 = vunpack.c.l.b16 %v1669
      %v1751 = vunpack.c.l.b16 %v1670
      %v1752 = vunpack.c.h.b16 %v1670
      %v1753 = vunpack.c.l.b16 %v1671
      %v1754 = vunpack.c.l.b16 %v1672
      %v1755 = vunpack.c.h.b16 %v1672
      %v1756 = vunpack.c.l.b16 %v1673
      %v1757 = vunpack.c.l.b16 %v1674
      %v1758 = vunpack.c.h.b16 %v1674
      %v1759 = vunpack.c.l.b16 %v1675
      %v1760 = vunpack.c.l.b16 %v1676
      %v1761 = vunpack.c.h.b16 %v1676
      %v1762 = vunpack.c.l.b16 %v1677
      %v1763 = vunpack.c.l.b16 %v1678
      %v1764 = vunpack.c.h.b16 %v1678
      %v1765 = vunpack.c.l.b16 %v1679
      %v1766 = vunpack.c.l.b16 %v1680
      %v1767 = vunpack.c.h.b16 %v1680
      %v1768 = vunpack.c.l.b16 %v1681
      %v1769 = vunpack.c.l.b16 %v1682
      %v1770 = vunpack.c.h.b16 %v1682
      %v1771 = vunpack.c.l.b16 %v1683
      %v1772 = vpack.c.b16 %v1751, %v1748
      %v1773 = vpack.c.b16 %v1752, %v1749
      %v1774 = vpack.c.b16 %v1753, %v1750
      %v1775 = vpack.c.b16 %v1757, %v1754
      %v1776 = vpack.c.b16 %v1758, %v1755
      %v1777 = vpack.c.b16 %v1759, %v1756
      %v1778 = vpack.c.b16 %v1763, %v1760
      %v1779 = vpack.c.b16 %v1764, %v1761
      %v1780 = vpack.c.b16 %v1765, %v1762
      %v1781 = vpack.c.b16 %v1769, %v1766
      %v1782 = vpack.c.b16 %v1770, %v1767
      %v1783 = vpack.c.b16 %v1771, %v1768
      %v1793 = vsel %vm701, %v1774, 0
      %v1796 = vsel %vm701, %v1777, 0
      %v1799 = vsel %vm701, %v1780, 0
      %v1802 = vsel %vm701, %v1783, 0
      %1804 = vmatprep.subr.bf16.mxu0 0
      %1805 = vmatpush1.bf16.msra.mxu0 %v1564
      %1806 = vmatprep.subr.bf16.mxu0 0
      %1807 = vmatpush1.bf16.msra.mxu0 %v1566
      %1808 = vmatprep.subr.bf16.mxu0 0
      %1809 = vmatpush1.bf16.msra.mxu0 %v1580
      %1810 = vmatprep.subr.bf16.mxu0 0
      %1811 = vmatpush1.bf16.msra.mxu0 %v1581
      %1812 = vmatprep.subr.bf16.mxu0 0
      %1813 = vmatpush1.bf16.msra.mxu0 %v1592
      %1814 = vmatprep.subr.bf16.mxu0 0
      %1815 = vmatpush1.bf16.msra.mxu0 %v1593
      %1816 = vmatprep.subr.bf16.mxu0 0
      %1817 = vmatpush1.bf16.msra.mxu0 %v1604
      %1818 = vmatprep.subr.bf16.mxu0 0
      %1819 = vmatpush1.bf16.msra.mxu0 %v1605
      %1820 = vmatprep.subr.bf16.mxu0 0
      %1821 = vmatpush1.bf16.msra.mxu0 %v1616
      %1822 = vmatprep.subr.bf16.mxu0 0
      %1823 = vmatpush1.bf16.msra.mxu0 %v1617
      %1824 = vmatprep.subr.bf16.mxu0 0
      %1825 = vmatpush1.bf16.msra.mxu0 %v1628
      %1826 = vmatprep.subr.bf16.mxu0 0
      %1827 = vmatpush1.bf16.msra.mxu0 %v1629
      %1828 = vmatprep.subr.bf16.mxu0 0
      %1829 = vmatpush1.bf16.msra.mxu0 %v1640
      %1830 = vmatprep.subr.bf16.mxu0 0
      %1831 = vmatpush1.bf16.msra.mxu0 %v1641
      %1832 = vmatprep.subr.bf16.mxu0 0
      %1833 = vmatpush1.bf16.msra.mxu0 %v1652
      %1834 = vmatprep.subr.bf16.mxu0 0
      %1835 = vmatpush1.bf16.msra.mxu0 %v1653
      %1836 = vmatprep.mubr.bf16.mxu0 %v1773
      %1837 = vmatmul.mubr.bf16.gmra.mrb[0].mxu0 %v1772
      %v1838 = vpop.f32.mrb[0].mxu0
      %v1839 = vadd.f32 %v1695, %v1838
      %v1840 = vpop.f32.mrb[0].mxu0
      %v1841 = vpop.f32.mrb[0].mxu0
      %v1842 = vadd.f32 %v1700, %v1841
      %v1843 = vpop.f32.mrb[0].mxu0
      %1844 = vmatprep.mubr.bf16.mxu0 %v1776
      %1845 = vmatmul.mubr.bf16.gmra.mrb[0].mxu0 %v1775
      %v1846 = vpop.f32.mrb[0].mxu0
      %v1847 = vadd.f32 %v1705, %v1846
      %v1848 = vpop.f32.mrb[0].mxu0
      %v1849 = vpop.f32.mrb[0].mxu0
      %v1850 = vadd.f32 %v1710, %v1849
      %v1851 = vpop.f32.mrb[0].mxu0
      %1852 = vmatprep.mubr.bf16.mxu0 %v1779
      %1853 = vmatmul.mubr.bf16.gmra.mrb[0].mxu0 %v1778
      %v1854 = vpop.f32.mrb[0].mxu0
      %v1855 = vadd.f32 %v1715, %v1854
      %v1856 = vpop.f32.mrb[0].mxu0
      %v1857 = vpop.f32.mrb[0].mxu0
      %v1858 = vadd.f32 %v1720, %v1857
      %v1859 = vpop.f32.mrb[0].mxu0
      %1860 = vmatprep.mubr.bf16.mxu0 %v1782
      %1861 = vmatmul.mubr.bf16.gmra.mrb[0].mxu0 %v1781
      %v1862 = vpop.f32.mrb[0].mxu0
      %v1863 = vadd.f32 %v1725, %v1862
      %v1864 = vpop.f32.mrb[0].mxu0
      %v1865 = vpop.f32.mrb[0].mxu0
      %v1866 = vadd.f32 %v1730, %v1865
      %v1867 = vpop.f32.mrb[0].mxu0
      %1868 = vdwg.mxu0
      %1869 = vmatprep.subr.bf16.mxu0 0
      %1870 = vmatpush1.bf16.msra.mxu0 %v1664
      %1871 = vmatprep.subr.bf16.mxu0 0
      %1872 = vmatpush1.bf16.msra.mxu0 %v1665
      %1873 = vmatprep.subr.bf16.mxu0 0
      %1874 = vmatpush1.bf16.msra.mxu0 0
      %1875 = vmatprep.subr.bf16.mxu0 0
      %1876 = vmatpush1.bf16.msra.mxu0 0
      %1877 = vmatprep.subr.bf16.mxu0 0
      %1878 = vmatpush1.bf16.msra.mxu0 0
      %1879 = vmatprep.subr.bf16.mxu0 0
      %1880 = vmatpush1.bf16.msra.mxu0 0
      %1881 = vmatprep.subr.bf16.mxu0 0
      %1882 = vmatpush1.bf16.msra.mxu0 0
      %1883 = vmatprep.subr.bf16.mxu0 0
      %1884 = vmatpush1.bf16.msra.mxu0 0
      %1885 = vmatprep.subr.bf16.mxu0 0
      %1886 = vmatpush1.bf16.msra.mxu0 0
      %1887 = vmatprep.subr.bf16.mxu0 0
      %1888 = vmatpush1.bf16.msra.mxu0 0
      %1889 = vmatprep.subr.bf16.mxu0 0
      %1890 = vmatpush1.bf16.msra.mxu0 0
      %1891 = vmatprep.subr.bf16.mxu0 0
      %1892 = vmatpush1.bf16.msra.mxu0 0
      %1893 = vmatprep.subr.bf16.mxu0 0
      %1894 = vmatpush1.bf16.msra.mxu0 0
      %1895 = vmatprep.subr.bf16.mxu0 0
      %1896 = vmatpush1.bf16.msra.mxu0 0
      %1897 = vmatprep.subr.bf16.mxu0 0
      %1898 = vmatpush1.bf16.msra.mxu0 0
      %1899 = vmatprep.subr.bf16.mxu0 0
      %1900 = vmatpush1.bf16.msra.mxu0 0
      %1901 = vmatprep.mubr.bf16.mxu0 0
      %1902 = vmatmul.mubr.bf16.gmra.mrb[0].mxu0 %v1793
      %v1903 = vpop.f32.mrb[0].mxu0
      %v1904 = vadd.f32 %v1839, %v1903
      %v1905 = vpop.f32.mrb[0].mxu0
      %v1906 = vpop.f32.mrb[0].mxu0
      %v1907 = vadd.f32 %v1842, %v1906
      %v1908 = vpop.f32.mrb[0].mxu0
      %1909 = vmatprep.mubr.bf16.mxu0 0
      %1910 = vmatmul.mubr.bf16.gmra.mrb[0].mxu0 %v1796
      %v1911 = vpop.f32.mrb[0].mxu0
      %v1912 = vadd.f32 %v1847, %v1911
      %v1913 = vpop.f32.mrb[0].mxu0
      %v1914 = vpop.f32.mrb[0].mxu0
      %v1915 = vadd.f32 %v1850, %v1914
      %v1916 = vpop.f32.mrb[0].mxu0
      %1917 = vmatprep.mubr.bf16.mxu0 0
      %1918 = vmatmul.mubr.bf16.gmra.mrb[0].mxu0 %v1799
      %v1919 = vpop.f32.mrb[0].mxu0
      %v1920 = vadd.f32 %v1855, %v1919
      %v1921 = vpop.f32.mrb[0].mxu0
      %v1922 = vpop.f32.mrb[0].mxu0
      %v1923 = vadd.f32 %v1858, %v1922
      %v1924 = vpop.f32.mrb[0].mxu0
      %1925 = vmatprep.mubr.bf16.mxu0 0
      %1926 = vmatmul.mubr.bf16.gmra.mrb[0].mxu0 %v1802
      %v1927 = vpop.f32.mrb[0].mxu0
      %v1928 = vadd.f32 %v1863, %v1927
      %v1929 = vpop.f32.mrb[0].mxu0
      %v1930 = vpop.f32.mrb[0].mxu0
      %v1931 = vadd.f32 %v1866, %v1930
      %v1932 = vpop.f32.mrb[0].mxu0
      %1933 = vdwg.mxu0
      %vm1934 = vcmp.ge.f32.partialorder %v1904, 0.0
      %vm1935 = vcmp.ge.f32.partialorder %v1907, 0.0
      %vm1936 = vcmp.ge.f32.partialorder %v1912, 0.0
      %vm1937 = vcmp.ge.f32.partialorder %v1915, 0.0
      %vm1938 = vcmp.ge.f32.partialorder %v1920, 0.0
      %vm1939 = vcmp.ge.f32.partialorder %v1923, 0.0
      %vm1940 = vcmp.ge.f32.partialorder %v1928, 0.0
      %vm1941 = vcmp.ge.f32.partialorder %v1931, 0.0
      %v1942 = vmul.f32 %v1904, 0.01
      %v1943 = vmul.f32 %v1907, 0.01
      %v1944 = vmul.f32 %v1912, 0.01
      %v1945 = vmul.f32 %v1915, 0.01
      %v1946 = vmul.f32 %v1920, 0.01
      %v1947 = vmul.f32 %v1923, 0.01
      %v1948 = vmul.f32 %v1928, 0.01
      %v1949 = vmul.f32 %v1931, 0.01
      %v1950 = vsel %vm1934, %v1904, %v1942
      %v1951 = vsel %vm1935, %v1907, %v1943
      %v1952 = vsel %vm1936, %v1912, %v1944
      %v1953 = vsel %vm1937, %v1915, %v1945
      %v1954 = vsel %vm1938, %v1920, %v1946
      %v1955 = vsel %vm1939, %v1923, %v1947
      %v1956 = vsel %vm1940, %v1928, %v1948
      %v1957 = vsel %vm1941, %v1931, %v1949
      %v1958 = vmul.f32 %v1950, %v529
      %v1959 = vmul.f32 %v1951, %v529
      %v1960 = vmul.f32 %v1952, %v529
      %v1961 = vmul.f32 %v1953, %v529
      %v1962 = vmul.f32 %v1954, %v529
      %v1963 = vmul.f32 %v1955, %v529
      %v1964 = vmul.f32 %v1956, %v529
      %v1965 = vmul.f32 %v1957, %v529
      %v1966 = vpack.c.bf16 %v1959, %v1958
      %v1967 = vpack.c.bf16 %v1961, %v1960
      %v1968 = vpack.c.bf16 %v1963, %v1962
      %v1969 = vpack.c.bf16 %v1965, %v1964
      %1974 = vrot.lane.b32.xlu0 %v1966, 11
      %v1975 = vpop.permute.xlu0 %1974
      %1976 = vrot.lane.b32.xlu0 %v1967, 11
      %v1977 = vpop.permute.xlu0 %1976
      %1978 = vrot.lane.b32.xlu0 %v1968, 11
      %v1979 = vpop.permute.xlu0 %1978
      %1980 = vrot.lane.b32.xlu0 %v1969, 11
      %v1981 = vpop.permute.xlu0 %1980
      %1986 = vst.msk [vmem:[#allocation2] sm:$0xff] %vm545, %v1975
      %1987 = vst.msk [vmem:[#allocation2 + $0x8] sm:$0xff] %vm547, %v1975
      %1988 = vst.msk [vmem:[#allocation2 + $0x10] sm:$0xff] %vm545, %v1977
      %1989 = vst.msk [vmem:[#allocation2 + $0x18] sm:$0xff] %vm547, %v1977
      %1990 = vst.msk [vmem:[#allocation2 + $0x20] sm:$0xff] %vm545, %v1979
      %1991 = vst.msk [vmem:[#allocation2 + $0x28] sm:$0xff] %vm547, %v1979
      %1992 = vst.msk [vmem:[#allocation2 + $0x30] sm:$0xff] %vm545, %v1981
      %1993 = vst.msk [vmem:[#allocation2 + $0x38] sm:$0xff] %vm547, %v1981
      %v1994 = vld [vmem:[#allocation2] sm:$0xff]
      %v1995 = vld [vmem:[#allocation2 + $0x8] sm:$0xff]
      %v1996 = vld [vmem:[#allocation2 + $0x10] sm:$0xff]
      %v1997 = vld [vmem:[#allocation2 + $0x18] sm:$0xff]
      %v1998 = vld [vmem:[#allocation2 + $0x20] sm:$0xff]
      %v1999 = vld [vmem:[#allocation2 + $0x28] sm:$0xff]
      %v2000 = vld [vmem:[#allocation2 + $0x30] sm:$0xff]
      %v2001 = vld [vmem:[#allocation2 + $0x38] sm:$0xff]
      %2004 = vrot.lane.b32.xlu0 %v1998, 127
      %v2005 = vpop.permute.xlu0 %2004
      %2006 = vrot.lane.b32.xlu0 %v1999, 127
      %v2007 = vpop.permute.xlu0 %2006
      %v2008 = vsel %vm567, %v2005, %v2007
      %2012 = vrot.lane.b32.xlu0 %v2000, 127
      %v2013 = vpop.permute.xlu0 %2012
      %2014 = vrot.lane.b32.xlu0 %v2001, 127
      %v2015 = vpop.permute.xlu0 %2014
      %v2016 = vsel %vm567, %v2013, %v2015
      %2018 = vrot.lane.b32.xlu0 %v1998, 126
      %v2019 = vpop.permute.xlu0 %2018
      %2020 = vrot.lane.b32.xlu0 %v1999, 126
      %v2021 = vpop.permute.xlu0 %2020
      %v2022 = vsel %vm580, %v2019, %v2021
      %2026 = vrot.lane.b32.xlu0 %v1996, 118
      %v2027 = vpop.permute.xlu0 %2026
      %2028 = vrot.lane.b32.xlu0 %v1997, 118
      %v2029 = vpop.permute.xlu0 %2028
      %v2030 = vsel %vm593, %v2027, %v2029
      %2034 = vrot.lane.b32.xlu0 %v1994, 117
      %v2035 = vpop.permute.xlu0 %2034
      %2036 = vrot.lane.b32.xlu0 %v1995, 117
      %v2037 = vpop.permute.xlu0 %2036
      %v2038 = vsel %vm606, %v2035, %v2037
      %2040 = vrot.lane.b32.xlu0 %v1996, 117
      %v2041 = vpop.permute.xlu0 %2040
      %2042 = vrot.lane.b32.xlu0 %v1997, 117
      %v2043 = vpop.permute.xlu0 %2042
      %v2044 = vsel %vm606, %v2041, %v2043
      %2046 = vrot.lane.b32.xlu0 %v1994, 116
      %v2047 = vpop.permute.xlu0 %2046
      %2048 = vrot.lane.b32.xlu0 %v1995, 116
      %v2049 = vpop.permute.xlu0 %2048
      %v2050 = vsel %vm619, %v2047, %v2049
      %2052 = vrot.lane.b32.xlu0 %v2000, 118
      %v2053 = vpop.permute.xlu0 %2052
      %2054 = vrot.lane.b32.xlu0 %v2001, 118
      %v2055 = vpop.permute.xlu0 %2054
      %v2056 = vsel %vm593, %v2053, %v2055
      %2058 = vrot.lane.b32.xlu0 %v1998, 117
      %v2059 = vpop.permute.xlu0 %2058
      %2060 = vrot.lane.b32.xlu0 %v1999, 117
      %v2061 = vpop.permute.xlu0 %2060
      %v2062 = vsel %vm606, %v2059, %v2061
      %2064 = vrot.lane.b32.xlu0 %v2000, 117
      %v2065 = vpop.permute.xlu0 %2064
      %2066 = vrot.lane.b32.xlu0 %v2001, 117
      %v2067 = vpop.permute.xlu0 %2066
      %v2068 = vsel %vm606, %v2065, %v2067
      %2070 = vrot.lane.b32.xlu0 %v1998, 116
      %v2071 = vpop.permute.xlu0 %2070
      %2072 = vrot.lane.b32.xlu0 %v1999, 116
      %v2073 = vpop.permute.xlu0 %2072
      %v2074 = vsel %vm619, %v2071, %v2073
      %2076 = vrot.lane.b32.xlu0 %v1996, 108
      %v2077 = vpop.permute.xlu0 %2076
      %2078 = vrot.lane.b32.xlu0 %v1997, 108
      %v2079 = vpop.permute.xlu0 %2078
      %v2080 = vsel %vm632, %v2077, %v2079
      %2082 = vrot.lane.b32.xlu0 %v1994, 107
      %v2083 = vpop.permute.xlu0 %2082
      %2084 = vrot.lane.b32.xlu0 %v1995, 107
      %v2085 = vpop.permute.xlu0 %2084
      %v2086 = vsel %vm645, %v2083, %v2085
      %2088 = vrot.lane.b32.xlu0 %v1996, 107
      %v2089 = vpop.permute.xlu0 %2088
      %2090 = vrot.lane.b32.xlu0 %v1997, 107
      %v2091 = vpop.permute.xlu0 %2090
      %v2092 = vsel %vm645, %v2089, %v2091
      %2094 = vrot.lane.b32.xlu0 %v1994, 106
      %v2095 = vpop.permute.xlu0 %2094
      %2096 = vrot.lane.b32.xlu0 %v1995, 106
      %v2097 = vpop.permute.xlu0 %2096
      %v2098 = vsel %vm658, %v2095, %v2097
      %v2100 = vld [vmem:[%s10] sm:$0xff]
      %v2101 = vld [vmem:[%s10 + $0x8] sm:$0xff]
      %v2102 = vld [vmem:[%s10 + $0x10] sm:$0xff]
      %v2103 = vld [vmem:[%s10 + $0x18] sm:$0xff]
      %v2104 = vld [vmem:[%s10 + $0x20] sm:$0xff]
      %v2105 = vld [vmem:[%s10 + $0x28] sm:$0xff]
      %v2106 = vld [vmem:[%s11] sm:$0xff]
      %v2107 = vld [vmem:[%s11 + $0x8] sm:$0xff]
      %v2108 = vld [vmem:[%s11 + $0x10] sm:$0xff]
      %v2109 = vld [vmem:[%s11 + $0x18] sm:$0xff]
      %v2110 = vld [vmem:[%s11 + $0x20] sm:$0xff]
      %v2111 = vld [vmem:[%s11 + $0x28] sm:$0xff]
      %2113 = vset.pattern.permute.xlu0 0
      %2114 = vperm.xlu0 %2113, %v2106
      %v2115 = vpop.permute.xlu0 %2114
      %2118 = vset.pattern.permute.xlu0 0
      %2119 = vperm.xlu0 %2118, %v2107
      %v2120 = vpop.permute.xlu0 %2119
      %2123 = vset.pattern.permute.xlu0 0
      %2124 = vperm.xlu0 %2123, %v2108
      %v2125 = vpop.permute.xlu0 %2124
      %2128 = vset.pattern.permute.xlu0 0
      %2129 = vperm.xlu0 %2128, %v2109
      %v2130 = vpop.permute.xlu0 %2129
      %2133 = vset.pattern.permute.xlu0 0
      %2134 = vperm.xlu0 %2133, %v2110
      %v2135 = vpop.permute.xlu0 %2134
      %2138 = vset.pattern.permute.xlu0 0
      %2139 = vperm.xlu0 %2138, %v2111
      %v2140 = vpop.permute.xlu0 %2139
      %v2148 = vunpack.c.l.b16 %v2100
      %v2149 = vunpack.c.h.b16 %v2100
      %v2150 = vunpack.c.l.b16 %v2101
      %v2151 = vunpack.c.h.b16 %v2101
      %v2152 = vunpack.c.l.b16 %v2102
      %v2153 = vunpack.c.h.b16 %v2102
      %v2154 = vunpack.c.l.b16 %v2103
      %v2155 = vunpack.c.h.b16 %v2103
      %v2156 = vunpack.c.l.b16 %v2104
      %v2157 = vunpack.c.h.b16 %v2104
      %v2158 = vunpack.c.l.b16 %v2105
      %v2159 = vunpack.c.h.b16 %v2105
      %v2160 = vpack.c.b16 %v2150, %v2148
      %v2161 = vpack.c.b16 %v2151, %v2149
      %v2162 = vpack.c.b16 %v2154, %v2152
      %v2163 = vpack.c.b16 %v2155, %v2153
      %v2164 = vpack.c.b16 %v2158, %v2156
      %v2165 = vpack.c.b16 %v2159, %v2157
      %2172 = vmatprep.subr.bf16.mxu0 0
      %2173 = vmatpush1.bf16.msra.mxu0 %v2000
      %2174 = vmatprep.subr.bf16.mxu0 0
      %2175 = vmatpush1.bf16.msra.mxu0 %v2008
      %2176 = vmatprep.subr.bf16.mxu0 0
      %2177 = vmatpush1.bf16.msra.mxu0 %v2016
      %2178 = vmatprep.subr.bf16.mxu0 0
      %2179 = vmatpush1.bf16.msra.mxu0 %v2022
      %2180 = vmatprep.subr.bf16.mxu0 0
      %2181 = vmatpush1.bf16.msra.mxu0 %v2030
      %2182 = vmatprep.subr.bf16.mxu0 0
      %2183 = vmatpush1.bf16.msra.mxu0 %v2038
      %2184 = vmatprep.subr.bf16.mxu0 0
      %2185 = vmatpush1.bf16.msra.mxu0 %v2044
      %2186 = vmatprep.subr.bf16.mxu0 0
      %2187 = vmatpush1.bf16.msra.mxu0 %v2050
      %2188 = vmatprep.subr.bf16.mxu0 0
      %2189 = vmatpush1.bf16.msra.mxu0 %v2056
      %2190 = vmatprep.subr.bf16.mxu0 0
      %2191 = vmatpush1.bf16.msra.mxu0 %v2062
      %2192 = vmatprep.subr.bf16.mxu0 0
      %2193 = vmatpush1.bf16.msra.mxu0 %v2068
      %2194 = vmatprep.subr.bf16.mxu0 0
      %2195 = vmatpush1.bf16.msra.mxu0 %v2074
      %2196 = vmatprep.subr.bf16.mxu0 0
      %2197 = vmatpush1.bf16.msra.mxu0 %v2080
      %2198 = vmatprep.subr.bf16.mxu0 0
      %2199 = vmatpush1.bf16.msra.mxu0 %v2086
      %2200 = vmatprep.subr.bf16.mxu0 0
      %2201 = vmatpush1.bf16.msra.mxu0 %v2092
      %2202 = vmatprep.subr.bf16.mxu0 0
      %2203 = vmatpush1.bf16.msra.mxu0 %v2098
      %2204 = vmatprep.mubr.bf16.mxu0 %v2161
      %2205 = vmatmul.mubr.bf16.gmra.mrb[0].mxu0 %v2160
      %v2206 = vpop.f32.mrb[0].mxu0
      %v2207 = vadd.f32 %v2115, %v2206
      %v2208 = vpop.f32.mrb[0].mxu0
      %v2209 = vpop.f32.mrb[0].mxu0
      %v2210 = vadd.f32 %v2120, %v2209
      %v2211 = vpop.f32.mrb[0].mxu0
      %2212 = vmatprep.mubr.bf16.mxu0 %v2163
      %2213 = vmatmul.mubr.bf16.gmra.mrb[0].mxu0 %v2162
      %v2214 = vpop.f32.mrb[0].mxu0
      %v2215 = vadd.f32 %v2125, %v2214
      %v2216 = vpop.f32.mrb[0].mxu0
      %v2217 = vpop.f32.mrb[0].mxu0
      %v2218 = vadd.f32 %v2130, %v2217
      %v2219 = vpop.f32.mrb[0].mxu0
      %2220 = vmatprep.mubr.bf16.mxu0 %v2165
      %2221 = vmatmul.mubr.bf16.gmra.mrb[0].mxu0 %v2164
      %v2222 = vpop.f32.mrb[0].mxu0
      %v2223 = vadd.f32 %v2135, %v2222
      %v2224 = vpop.f32.mrb[0].mxu0
      %v2225 = vpop.f32.mrb[0].mxu0
      %v2226 = vadd.f32 %v2140, %v2225
      %v2227 = vpop.f32.mrb[0].mxu0
      %2228 = vdwg.mxu0
      %v2229 = vtanh.pop %v2207
      %v2230 = vtanh.pop %v2210
      %v2231 = vtanh.pop %v2215
      %v2232 = vtanh.pop %v2218
      %v2233 = vtanh.pop %v2223
      %v2234 = vtanh.pop %v2226
      %2235 = vst [vmem:[%s413] sm:$0xff] %v2229
      %2236 = vst [vmem:[%s413 + $0x8] sm:$0xff] %v2230
      %2237 = vst [vmem:[%s413 + $0x10] sm:$0xff] %v2231
      %2238 = vst [vmem:[%s413 + $0x18] sm:$0xff] %v2232
      %2239 = vst [vmem:[%s413 + $0x20] sm:$0xff] %v2233
      %2240 = vst [vmem:[%s413 + $0x28] sm:$0xff] %v2234
      %p2241 = scmp.lt.s32.totalorder %s23, 1
      %s2242 = scalar_select %p2241, %s23, 1
      %s2243 = smul.addr %s2242, 6
      %s2244 = smul.addr %s2243, 8
      %s2245 = scalar_lea.vmem %s12, %s2244
      // Predicated region
      $region69: #{decoder_forward_pallas.1} parent=67 // pred_check
        %p2246 = pneg %p298
      $region70: #{decoder_forward_pallas.1} parent=67 // pred_check_branch
        %2248 = sbr.rel (%p2246) target = $region72
      $region71: #{decoder_forward_pallas.1} parent=67 // pred_region
        _
      $region72: #{decoder_forward_pallas.1} parent=67 // pred_fallthru
        _
    $region68: #{decoder_forward_pallas.1} parent=5 // pred_fallthru
      _
    %p2249 = scmp.le.s32.totalorder 2, %s18
    // Predicated region
    $region73: #{decoder_forward_pallas.1} parent=5 // pred_check
      %p2250 = pneg %p2249
    $region74: #{decoder_forward_pallas.1} parent=5 // pred_check_branch
      %2252 = sbr.rel (%p2250) target = $region76
    $region75: #{decoder_forward_pallas.1} parent=5 // pred_region
      %s2253 = ssub.s32 %s18, 2
      // Predicated region
      $region77: #{decoder_forward_pallas.1} parent=75 // pred_check
        %p2254 = pneg %p304
      $region78: #{decoder_forward_pallas.1} parent=75 // pred_check_branch
        %2256 = sbr.rel (%p2254) target = $region80
      $region79: #{decoder_forward_pallas.1} parent=75 // pred_region
        %p2257 = scmp.lt.s32.totalorder %s24, 1
        %s2258 = scalar_select %p2257, %s24, 1
        %s2259 = smul.addr %s2258, 6
        %s2260 = smul.addr %s2259, 8
        %s2261 = scalar_lea.vmem %s12, %s2260
      $region80: #{decoder_forward_pallas.1} parent=75 // pred_fallthru
        _
    $region76: #{decoder_forward_pallas.1} parent=5 // pred_fallthru
      _
  $region6: #{decoder_forward_pallas.1} parent=0 // loop_footer
    %s22 = sadd.s32 1, %s18
  $region7: #{decoder_forward_pallas.1} parent=0 // loop_footer_branch
    %17 = sbr.rel target = $region3
  $region8: #{decoder_forward_pallas.1} parent=0 // loop_exit
    _

</llo_original>
